<compile_context>
chip_gen: v7x
topology: tpu7x:2x2x1
jax: 0.10.0
libtpu: 0.0.40
codegen_flags: <defaults>
</compile_context>

<pallas_src>
import functools

import jax
import jax.numpy as jnp
import numpy as np
from jax import lax
from jax.experimental import pallas as pl
from jax.experimental.pallas import tpu as pltpu


def _round_up(x, m):
    return (x + m - 1) // m * m


# -----------------------------------------------------------------------------
# Pallas kernel: in-VMEM im2col + conv-as-matmul + LSTM gate math.
# One grid step processes one batch element (tile_m = H*W spatial positions).
# -----------------------------------------------------------------------------
def convlstm_cell_kernel(x_ref, w_ref, b_ref, mask_ref, c_ref,
                         h_out_ref, c_out_ref, *, width, tile_m, ch, cp):
    """
    x_ref    : (cp, tile_m)   f32  channel-first [x; h] slab (zero-padded chans)
    w_ref    : (4*ch, 9*cp)   bf16 conv weight, tap-major / channel-minor
    b_ref    : (4*ch, 1)      f32  bias column
    mask_ref : (9, tile_m)    f32  per-tap boundary (zero-padding) masks
    c_ref    : (ch, tile_m)   f32  current cell state
    outputs  : (ch, tile_m)   f32  h_next, c_next  (lane-dense stores)
    """
    xt = x_ref[...]  # (cp, tile_m) f32

    # In-VMEM im2col: 9 lane-rolled + masked copies stacked along sublanes.
    taps = []
    for t in range(9):
        dy = t // 3 - 1
        dx = t % 3 - 1
        d = dy * width + dx
        if d == 0:
            taps.append(xt)  # center tap: no shift, mask is all-ones
        else:
            shifted = pltpu.roll(xt, shift=(-d) % tile_m, axis=1)
            taps.append(shifted * mask_ref[t:t + 1, :])
    patches = jnp.concatenate(taps, axis=0).astype(jnp.bfloat16)  # (9*cp, tile_m)

    # Conv-as-matmul on the MXU: bf16 inputs, f32 accumulation -> (4*ch, tile_m).
    acc = jnp.dot(w_ref[...], patches, preferred_element_type=jnp.float32)
    acc = acc + b_ref[...]  # (4*ch, 1) broadcast along lanes

    # Gate splits: whole-vreg sublane slices (ch is a multiple of 8).
    i = jax.nn.sigmoid(acc[0 * ch:1 * ch, :])
    f = jax.nn.sigmoid(acc[1 * ch:2 * ch, :])
    o = jax.nn.sigmoid(acc[2 * ch:3 * ch, :])
    g = jnp.tanh(acc[3 * ch:4 * ch, :])

    c_cur = c_ref[...]
    c_next = f * c_cur + i * g
    h_next = o * jnp.tanh(c_next)

    h_out_ref[...] = h_next.astype(h_out_ref.dtype)
    c_out_ref[...] = c_next.astype(c_out_ref.dtype)


# -----------------------------------------------------------------------------
# Wrapper: layout glue (NCHW -> channel-first flat), weight prep, pallas_call.
# -----------------------------------------------------------------------------
def convlstm_cell_forward(x, h_cur, c_cur, w_hwio, b):
    """x, h_cur, c_cur are NCHW float32. Returns (h_next, c_next) in NCHW.

    TODO(synk): in a full ConvLSTM sequence, keep x/h/c in the channel-first
    flattened (C, B*H*W) layout across time steps and only convert NCHW at
    sequence boundaries (the transposes below are per-call interface glue).
    """
    B, Cin, H, W = x.shape
    Ch = h_cur.shape[1]
    C = Cin + Ch
    M = B * H * W
    tile_m = H * W
    assert tile_m % 128 == 0, "H*W must be a multiple of 128 (lane-dense tiles)"
    assert Ch % 8 == 0, "hidden channels must be a multiple of 8 sublanes"
    Cp = _round_up(C, 8)        # pad contraction channels to a sublane multiple
    K = 9 * Cp

    # Channel-first flattened layout (single cheap transpose from NCHW).
    xh = jnp.concatenate([x, h_cur], axis=1)                        # (B, C, H, W)
    xh_t = jnp.transpose(xh, (1, 0, 2, 3)).reshape(C, M)            # (C, M)
    xh_t = jnp.pad(xh_t, ((0, Cp - C), (0, 0)))                     # (Cp, M)
    c_t = jnp.transpose(c_cur, (1, 0, 2, 3)).reshape(Ch, M)         # (Ch, M)

    # Weights: HWIO -> (4*Ch, 9*Cp), tap-major / channel-minor, zero-pad, bf16.
    w_pad = jnp.pad(w_hwio, ((0, 0), (0, 0), (0, Cp - C), (0, 0)))  # (3,3,Cp,4Ch)
    w_t = jnp.transpose(w_pad.reshape(K, 4 * Ch), (1, 0)).astype(jnp.bfloat16)
    b_col = b.reshape(4 * Ch, 1).astype(jnp.float32)

    # Static per-tap boundary masks: valid(y+dy, x+dx) for each output lane.
    ys, xs = np.meshgrid(np.arange(H), np.arange(W), indexing="ij")
    ys = ys.reshape(-1)
    xs = xs.reshape(-1)
    mask_np = np.zeros((9, tile_m), np.float32)
    for t in range(9):
        dy = t // 3 - 1
        dx = t % 3 - 1
        valid = ((ys + dy >= 0) & (ys + dy < H) &
                 (xs + dx >= 0) & (xs + dx < W))
        mask_np[t] = valid.astype(np.float32)
    masks = jnp.asarray(mask_np)

    kernel = functools.partial(convlstm_cell_kernel,
                               width=W, tile_m=tile_m, ch=Ch, cp=Cp)

    grid = (B,)  # one step per batch element; "parallel" -> both v7x TCs
    h_t, c_next_t = pl.pallas_call(
        kernel,
        out_shape=(
            jax.ShapeDtypeStruct((Ch, M), jnp.float32),
            jax.ShapeDtypeStruct((Ch, M), jnp.float32),
        ),
        grid_spec=pltpu.PrefetchScalarGridSpec(
            num_scalar_prefetch=0,
            grid=grid,
            in_specs=[
                pl.BlockSpec((Cp, tile_m), lambda i: (0, i)),
                pl.BlockSpec((4 * Ch, K), lambda i: (0, 0)),
                pl.BlockSpec((4 * Ch, 1), lambda i: (0, 0)),
                pl.BlockSpec((9, tile_m), lambda i: (0, 0)),
                pl.BlockSpec((Ch, tile_m), lambda i: (0, i)),
            ],
            out_specs=[
                pl.BlockSpec((Ch, tile_m), lambda i: (0, i)),
                pl.BlockSpec((Ch, tile_m), lambda i: (0, i)),
            ],
        ),
        input_output_aliases={4: 1},  # c_cur buffer reused in-place for c_next
        compiler_params=pltpu.CompilerParams(
            dimension_semantics=("parallel",),
            vmem_limit_bytes=32 * 1024 * 1024),
    )(xh_t, w_t, b_col, masks, c_t)

    # Back to NCHW for the module interface.
    h_next = jnp.transpose(h_t.reshape(Ch, B, H, W), (1, 0, 2, 3))
    c_next = jnp.transpose(c_next_t.reshape(Ch, B, H, W), (1, 0, 2, 3))
    return h_next, c_next


# -----------------------------------------------------------------------------
# Pure-JAX reference (mirrors the PyTorch module exactly, NCHW conv, f32).
# -----------------------------------------------------------------------------
def convlstm_cell_reference(x, h_cur, c_cur, w_hwio, b):
    Ch = h_cur.shape[1]
    w_oihw = jnp.transpose(w_hwio, (3, 2, 0, 1))  # HWIO -> OIHW
    xh = jnp.concatenate([x, h_cur], axis=1)      # NCHW concat on channels
    conv = lax.conv_general_dilated(
        xh, w_oihw, window_strides=(1, 1), padding=((1, 1), (1, 1)),
        dimension_numbers=("NCHW", "OIHW", "NCHW"))
    conv = conv + b.reshape(1, 4 * Ch, 1, 1)
    cc_i, cc_f, cc_o, cc_g = jnp.split(conv, 4, axis=1)
    i = jax.nn.sigmoid(cc_i)
    f = jax.nn.sigmoid(cc_f)
    o = jax.nn.sigmoid(cc_o)
    g = jnp.tanh(cc_g)
    c_next = f * c_cur + i * g
    h_next = o * jnp.tanh(c_next)
    return h_next, c_next


if __name__ == "__main__":
    # Module config: ConvLSTMCell(ch_in=4, ch_hidden=32, kernel_size=3, bias=True)
    B, Cin, Chid, H, W = 2, 4, 32, 16, 16

    key = jax.random.PRNGKey(0)
    k_x, k_h, k_c, k_w, k_b = jax.random.split(key, 5)

    x = jax.random.normal(k_x, (B, Cin, H, W), dtype=jnp.float32)
    h_cur = jax.random.normal(k_h, (B, Chid, H, W), dtype=jnp.float32)
    c_cur = jax.random.normal(k_c, (B, Chid, H, W), dtype=jnp.float32)

    # Deterministic synthetic conv parameters (HWIO): (3, 3, Cin+Chid, 4*Chid)
    w_hwio = 0.1 * jax.random.normal(
        k_w, (3, 3, Cin + Chid, 4 * Chid), dtype=jnp.float32)
    bias = 0.1 * jax.random.normal(k_b, (4 * Chid,), dtype=jnp.float32)

    fwd = jax.jit(convlstm_cell_forward)
    h_next, c_next = fwd(x, h_cur, c_cur, w_hwio, bias)
    jax.block_until_ready((h_next, c_next))

    # Correctness check against pure-f32 NCHW reference (bf16 MXU inputs ->
    # relaxed tolerance).
    h_ref, c_ref = convlstm_cell_reference(x, h_cur, c_cur, w_hwio, bias)
    np.testing.assert_allclose(np.asarray(h_next), np.asarray(h_ref),
                               rtol=5e-2, atol=5e-2)
    np.testing.assert_allclose(np.asarray(c_next), np.asarray(c_ref),
                               rtol=5e-2, atol=5e-2)

    print("KERNEL_OK")
</pallas_src>

<mosaic_0001>
module attributes {stable_mosaic.version = 11 : i64} {
  func.func @convlstm_cell_kernel(%arg0: i32, %arg1: memref<40x256xf32, #tpu.memory_space<vmem>>, %arg2: memref<128x360xbf16, #tpu.memory_space<vmem>>, %arg3: memref<128x1xf32, #tpu.memory_space<vmem>>, %arg4: memref<9x256xf32, #tpu.memory_space<vmem>>, %arg5: memref<32x256xf32, #tpu.memory_space<vmem>>, %arg6: memref<32x256xf32, #tpu.memory_space<vmem>>, %arg7: memref<32x256xf32, #tpu.memory_space<vmem>>) attributes {dimension_semantics = [#tpu.dimension_semantics<parallel>], iteration_bounds = array<i64: 2>, scalar_prefetch = 0 : i64, scratch_operands = 0 : i64, tpu.core_type = #tpu.core_type<tc>, window_params = [{transform_indices = @transform_0, window_bounds = array<i64: 40, 256>}, {pipeline_mode = #tpu.pipeline_mode<synchronous>, transform_indices = @transform_1, window_bounds = array<i64: 128, 360>}, {pipeline_mode = #tpu.pipeline_mode<synchronous>, transform_indices = @transform_2, window_bounds = array<i64: 128, 1>}, {pipeline_mode = #tpu.pipeline_mode<synchronous>, transform_indices = @transform_3, window_bounds = array<i64: 9, 256>}, {transform_indices = @transform_4, window_bounds = array<i64: 32, 256>}, {transform_indices = @transform_5, window_bounds = array<i64: 32, 256>}, {transform_indices = @transform_6, window_bounds = array<i64: 32, 256>}]} {
    %c0 = arith.constant 0 : index
    %c0_0 = arith.constant 0 : index
    %0 = vector.load %arg1[%c0, %c0_0] : memref<40x256xf32, #tpu.memory_space<vmem>>, vector<40x256xf32>
    %c17_i32 = arith.constant 17 : i32
    %1 = tpu.dynamic_rotate %0 by %c17_i32 dim 1 : vector<40x256xf32>, i32 -> vector<40x256xf32>
    %c0_1 = arith.constant 0 : index
    %c0_2 = arith.constant 0 : index
    %2 = vector.load %arg4[%c0_1, %c0_2] : memref<9x256xf32, #tpu.memory_space<vmem>>, vector<1x256xf32>
    %3 = vector.broadcast %2 : vector<1x256xf32> to vector<40x256xf32>
    %4 = arith.mulf %1, %3 : vector<40x256xf32>
    %c16_i32 = arith.constant 16 : i32
    %5 = tpu.dynamic_rotate %0 by %c16_i32 dim 1 : vector<40x256xf32>, i32 -> vector<40x256xf32>
    %c1 = arith.constant 1 : index
    %c0_3 = arith.constant 0 : index
    %6 = vector.load %arg4[%c1, %c0_3] : memref<9x256xf32, #tpu.memory_space<vmem>>, vector<1x256xf32>
    %7 = vector.broadcast %6 : vector<1x256xf32> to vector<40x256xf32>
    %8 = arith.mulf %5, %7 : vector<40x256xf32>
    %c15_i32 = arith.constant 15 : i32
    %9 = tpu.dynamic_rotate %0 by %c15_i32 dim 1 : vector<40x256xf32>, i32 -> vector<40x256xf32>
    %c2 = arith.constant 2 : index
    %c0_4 = arith.constant 0 : index
    %10 = vector.load %arg4[%c2, %c0_4] : memref<9x256xf32, #tpu.memory_space<vmem>>, vector<1x256xf32>
    %11 = vector.broadcast %10 : vector<1x256xf32> to vector<40x256xf32>
    %12 = arith.mulf %9, %11 : vector<40x256xf32>
    %c1_i32 = arith.constant 1 : i32
    %13 = tpu.dynamic_rotate %0 by %c1_i32 dim 1 : vector<40x256xf32>, i32 -> vector<40x256xf32>
    %c3 = arith.constant 3 : index
    %c0_5 = arith.constant 0 : index
    %14 = vector.load %arg4[%c3, %c0_5] : memref<9x256xf32, #tpu.memory_space<vmem>>, vector<1x256xf32>
    %15 = vector.broadcast %14 : vector<1x256xf32> to vector<40x256xf32>
    %16 = arith.mulf %13, %15 : vector<40x256xf32>
    %c255_i32 = arith.constant 255 : i32
    %17 = tpu.dynamic_rotate %0 by %c255_i32 dim 1 : vector<40x256xf32>, i32 -> vector<40x256xf32>
    %c5 = arith.constant 5 : index
    %c0_6 = arith.constant 0 : index
    %18 = vector.load %arg4[%c5, %c0_6] : memref<9x256xf32, #tpu.memory_space<vmem>>, vector<1x256xf32>
    %19 = vector.broadcast %18 : vector<1x256xf32> to vector<40x256xf32>
    %20 = arith.mulf %17, %19 : vector<40x256xf32>
    %c241_i32 = arith.constant 241 : i32
    %21 = tpu.dynamic_rotate %0 by %c241_i32 dim 1 : vector<40x256xf32>, i32 -> vector<40x256xf32>
    %c6 = arith.constant 6 : index
    %c0_7 = arith.constant 0 : index
    %22 = vector.load %arg4[%c6, %c0_7] : memref<9x256xf32, #tpu.memory_space<vmem>>, vector<1x256xf32>
    %23 = vector.broadcast %22 : vector<1x256xf32> to vector<40x256xf32>
    %24 = arith.mulf %21, %23 : vector<40x256xf32>
    %c240_i32 = arith.constant 240 : i32
    %25 = tpu.dynamic_rotate %0 by %c240_i32 dim 1 : vector<40x256xf32>, i32 -> vector<40x256xf32>
    %c7 = arith.constant 7 : index
    %c0_8 = arith.constant 0 : index
    %26 = vector.load %arg4[%c7, %c0_8] : memref<9x256xf32, #tpu.memory_space<vmem>>, vector<1x256xf32>
    %27 = vector.broadcast %26 : vector<1x256xf32> to vector<40x256xf32>
    %28 = arith.mulf %25, %27 : vector<40x256xf32>
    %c239_i32 = arith.constant 239 : i32
    %29 = tpu.dynamic_rotate %0 by %c239_i32 dim 1 : vector<40x256xf32>, i32 -> vector<40x256xf32>
    %c8 = arith.constant 8 : index
    %c0_9 = arith.constant 0 : index
    %30 = vector.load %arg4[%c8, %c0_9] : memref<9x256xf32, #tpu.memory_space<vmem>>, vector<1x256xf32>
    %31 = vector.broadcast %30 : vector<1x256xf32> to vector<40x256xf32>
    %32 = arith.mulf %29, %31 : vector<40x256xf32>
    %33 = tpu.concatenate %4, %8, %12, %16, %0, %20, %24, %28, %32 in 0 : vector<40x256xf32>, vector<40x256xf32>, vector<40x256xf32>, vector<40x256xf32>, vector<40x256xf32>, vector<40x256xf32>, vector<40x256xf32>, vector<40x256xf32>, vector<40x256xf32> -> vector<360x256xf32>
    %34 = arith.truncf %33 : vector<360x256xf32> to vector<360x256xbf16>
    %c0_10 = arith.constant 0 : index
    %c0_11 = arith.constant 0 : index
    %35 = vector.load %arg2[%c0_10, %c0_11] : memref<128x360xbf16, #tpu.memory_space<vmem>>, vector<128x360xbf16>
    %cst = arith.constant dense<0.000000e+00> : vector<128x256xf32>
    %36 = tpu.matmul %35, %34, %cst {dimension_numbers = #tpu.dot_dimension_numbers<[1], [0], [0], [1], [0, 0, 1, 1], [], []>} : vector<128x360xbf16>, vector<360x256xbf16>, vector<128x256xf32> -> vector<128x256xf32>
    %c0_12 = arith.constant 0 : index
    %c0_13 = arith.constant 0 : index
    %37 = vector.load %arg3[%c0_12, %c0_13] : memref<128x1xf32, #tpu.memory_space<vmem>>, vector<128x1xf32>
    %38 = vector.broadcast %37 : vector<128x1xf32> to vector<128x256xf32>
    %39 = arith.addf %36, %38 : vector<128x256xf32>
    %40 = vector.extract_strided_slice %39 {offsets = [0, 0], sizes = [32, 256], strides = [1, 1]} : vector<128x256xf32> to vector<32x256xf32>
    %41 = arith.negf %40 : vector<32x256xf32>
    %42 = math.exp %41 : vector<32x256xf32>
    %cst_14 = arith.constant 1.000000e+00 : f32
    %43 = vector.broadcast %cst_14 : f32 to vector<32x256xf32>
    %44 = arith.addf %43, %42 : vector<32x256xf32>
    %45 = arith.divf %43, %44 : vector<32x256xf32>
    %46 = vector.extract_strided_slice %39 {offsets = [32, 0], sizes = [32, 256], strides = [1, 1]} : vector<128x256xf32> to vector<32x256xf32>
    %47 = arith.negf %46 : vector<32x256xf32>
    %48 = math.exp %47 : vector<32x256xf32>
    %cst_15 = arith.constant 1.000000e+00 : f32
    %49 = vector.broadcast %cst_15 : f32 to vector<32x256xf32>
    %50 = arith.addf %49, %48 : vector<32x256xf32>
    %51 = arith.divf %49, %50 : vector<32x256xf32>
    %52 = vector.extract_strided_slice %39 {offsets = [64, 0], sizes = [32, 256], strides = [1, 1]} : vector<128x256xf32> to vector<32x256xf32>
    %53 = arith.negf %52 : vector<32x256xf32>
    %54 = math.exp %53 : vector<32x256xf32>
    %cst_16 = arith.constant 1.000000e+00 : f32
    %55 = vector.broadcast %cst_16 : f32 to vector<32x256xf32>
    %56 = arith.addf %55, %54 : vector<32x256xf32>
    %57 = arith.divf %55, %56 : vector<32x256xf32>
    %58 = vector.extract_strided_slice %39 {offsets = [96, 0], sizes = [32, 256], strides = [1, 1]} : vector<128x256xf32> to vector<32x256xf32>
    %59 = math.tanh %58 : vector<32x256xf32>
    %c0_17 = arith.constant 0 : index
    %c0_18 = arith.constant 0 : index
    %60 = vector.load %arg5[%c0_17, %c0_18] : memref<32x256xf32, #tpu.memory_space<vmem>>, vector<32x256xf32>
    %61 = arith.mulf %51, %60 : vector<32x256xf32>
    %62 = arith.mulf %45, %59 : vector<32x256xf32>
    %63 = arith.addf %61, %62 : vector<32x256xf32>
    %64 = math.tanh %63 : vector<32x256xf32>
    %65 = arith.mulf %57, %64 : vector<32x256xf32>
    %c0_19 = arith.constant 0 : index
    %c0_20 = arith.constant 0 : index
    %66 = vector.load %arg6[%c0_19, %c0_20] : memref<32x256xf32, #tpu.memory_space<vmem>>, vector<32x256xf32>
    tpu.vector_store %arg6[%c0_19, %c0_20], %65 {strides = array<i32>} : memref<32x256xf32, #tpu.memory_space<vmem>>, vector<32x256xf32>,
    %c0_21 = arith.constant 0 : index
    %c0_22 = arith.constant 0 : index
    %67 = vector.load %arg7[%c0_21, %c0_22] : memref<32x256xf32, #tpu.memory_space<vmem>>, vector<32x256xf32>
    tpu.vector_store %arg7[%c0_21, %c0_22], %63 {strides = array<i32>} : memref<32x256xf32, #tpu.memory_space<vmem>>, vector<32x256xf32>,
    return
  }
  func.func @transform_0(%arg0: i32) -> (i32, i32) {
    %c0_i32 = arith.constant 0 : i32
    %c0_i32_0 = arith.constant 0 : i32
    return %c0_i32, %arg0 : i32, i32
  }
  func.func @transform_1(%arg0: i32) -> (i32, i32) {
    %c0_i32 = arith.constant 0 : i32
    %c0_i32_0 = arith.constant 0 : i32
    %c0_i32_1 = arith.constant 0 : i32
    return %c0_i32, %c0_i32_0 : i32, i32
  }
  func.func @transform_2(%arg0: i32) -> (i32, i32) {
    %c0_i32 = arith.constant 0 : i32
    %c0_i32_0 = arith.constant 0 : i32
    %c0_i32_1 = arith.constant 0 : i32
    return %c0_i32, %c0_i32_0 : i32, i32
  }
  func.func @transform_3(%arg0: i32) -> (i32, i32) {
    %c0_i32 = arith.constant 0 : i32
    %c0_i32_0 = arith.constant 0 : i32
    %c0_i32_1 = arith.constant 0 : i32
    return %c0_i32, %c0_i32_0 : i32, i32
  }
  func.func @transform_4(%arg0: i32) -> (i32, i32) {
    %c0_i32 = arith.constant 0 : i32
    %c0_i32_0 = arith.constant 0 : i32
    return %c0_i32, %arg0 : i32, i32
  }
  func.func @transform_5(%arg0: i32) -> (i32, i32) {
    %c0_i32 = arith.constant 0 : i32
    %c0_i32_0 = arith.constant 0 : i32
    return %c0_i32, %arg0 : i32, i32
  }
  func.func @transform_6(%arg0: i32) -> (i32, i32) {
    %c0_i32 = arith.constant 0 : i32
    %c0_i32_0 = arith.constant 0 : i32
    return %c0_i32, %arg0 : i32, i32
  }
}

</mosaic_0001>

<llo_original>
// kernel: convlstm_cell_forward.1
$region0: #{convlstm_cell_forward.1}
  #allocation0 [shape = 'u32[]', space=smem, size = 0x4, offset = 0x4, fixed_abs, tag = 'smem constant byte address 0x4 - core index']
  #allocation1 [shape = 'u32[144,128]{1,0:T(1,128)}', space=vmem, size = 0x12000, scoped, tag = 'internal scratch']
  %s0 = inlined_call_operand.vmem [shape: f32[40,512], index: 0, kind: input, shape index: {}]
  %s1 = inlined_call_operand.vmem [shape: bf16[128,360], index: 1, kind: input, shape index: {}]
  %s2 = inlined_call_operand.vmem [shape: f32[128,1], index: 2, kind: input, shape index: {}]
  %s3 = inlined_call_operand.vmem [shape: f32[9,256], index: 3, kind: input, shape index: {}]
  %s4 = inlined_call_operand.vmem [shape: f32[32,512], index: 4, kind: input, shape index: {}, may-alias: {4,6}]
  %s5 = inlined_call_operand.vmem [shape: f32[32,512], index: 5, kind: output, shape index: {0}]
  %s6 = inlined_call_operand.vmem [shape: f32[32,512], index: 6, kind: output, shape index: {1}, may-alias: {4,6}]
  %7 = xla_tuple %s5, %s6
  %s8 = sld [smem:[#allocation0]]
  $region145: #{convlstm_cell_forward.1} parent=0
    _
  %s10 = ssub.s32 1, %s8
  %s11 = scalar_select 0, %s10, %s8
  $region1: #{convlstm_cell_forward.1} parent=0
    #allocation2 [shape = 'u8[81920]{0}', space=vmem, size = 0x14000, scoped, tag = 'input window, operand 0']
    #allocation3 [shape = 'u8[65536]{0}', space=vmem, size = 0x10000, scoped, tag = 'input window, operand 4']
    #allocation4 [shape = 'u8[65536]{0}', space=vmem, size = 0x10000, scoped, tag = 'output window, operand 0']
    #allocation5 [shape = 'u8[65536]{0}', space=vmem, size = 0x10000, scoped, tag = 'output window, operand 1']
    loop: start=0, step=1, limit=4
    $region2: #{convlstm_cell_forward.1} parent=1 // loop_pre_header
      _
    $region3: #{convlstm_cell_forward.1} parent=1 // loop_header
      %s13 = sphi 0, %s17
      %p14 = scmp.ge.s32.totalorder %s13, 4
      %s23 = sphi 0, %s25
      %s26 = sphi 0, %s23
      %s27 = sphi 0, %s26
      %s43 = sphi 0, %s27
      %s47 = sphi 0, %s47
      %s49 = sphi 0, %s47
      %s50 = sphi 0, %s49
      %s64 = sphi 0, %s50
      %s68 = sphi 0, %s68
      %s70 = sphi 0, %s68
      %s71 = sphi 0, %s70
      %s85 = sphi 0, %s71
      %s89 = sphi 0, %s89
      %s91 = sphi 0, %s89
      %s92 = sphi 0, %s91
      %s106 = sphi 0, %s92
      %s112 = sphi 0, %s114
      %s115 = sphi 0, %s112
      %s116 = sphi 0, %s115
      %s132 = sphi 0, %s116
      %s138 = sphi 0, %s140
      %s141 = sphi 0, %s138
      %s142 = sphi 0, %s141
      %s158 = sphi 0, %s142
      %s164 = sphi 0, %s166
      %s167 = sphi 0, %s164
      %s168 = sphi 0, %s167
      %s184 = sphi 0, %s168
    $region4: #{convlstm_cell_forward.1} parent=1 // loop_header_branch
      %16 = sbr.rel (%p14) target = $region8
    $region5: #{convlstm_cell_forward.1} parent=1 // loop_body
      %s18 = ssub.s32 %s13, 1
      %s19 = ssub.s32 %s13, 2
      %s20 = sadd.s32 %s13, 1
      %s21 = ssub.s32 %s13, %s20
      %p22 = scmp.eq.s32.totalorder %s21, 0
      %s24 = sadd.s32 %s23, 1
      %s25 = scalar_select %p22, %s23, %s24
      %p28 = pneg %p22
      %p29 = scmp.eq.s32.totalorder %s13, 1
      %p30 = por %p28, %p29
      %p31 = scmp.ne.s32.totalorder %s23, %s26
      %p32 = scmp.eq.s32.totalorder %s13, 0
      %p33 = por %p31, %p32
      %p34 = scmp.ne.s32.totalorder %s23, %s26
      %p35 = scmp.eq.s32.totalorder %s18, 1
      %p36 = por %p34, %p35
      %p37 = scmp.ne.s32.totalorder %s26, %s27
      %p38 = scmp.eq.s32.totalorder %s18, 0
      %p39 = por %p37, %p38
      %p40 = scmp.ne.s32.totalorder %s26, %s27
      %p41 = scmp.eq.s32.totalorder %s19, 1
      %p42 = por %p40, %p41
      %p44 = scmp.ne.s32.totalorder %s27, %s43
      %p45 = scmp.eq.s32.totalorder %s19, 0
      %p46 = por %p44, %p45
      %s48 = sadd.s32 %s47, 1
      %p51 = scmp.eq.s32.totalorder %s13, 1
      %p52 = scmp.ne.s32.totalorder %s47, %s49
      %p53 = scmp.eq.s32.totalorder %s13, 0
      %p54 = por %p52, %p53
      %p55 = scmp.ne.s32.totalorder %s47, %s49
      %p56 = scmp.eq.s32.totalorder %s18, 1
      %p57 = por %p55, %p56
      %p58 = scmp.ne.s32.totalorder %s49, %s50
      %p59 = scmp.eq.s32.totalorder %s18, 0
      %p60 = por %p58, %p59
      %p61 = scmp.ne.s32.totalorder %s49, %s50
      %p62 = scmp.eq.s32.totalorder %s19, 1
      %p63 = por %p61, %p62
      %p65 = scmp.ne.s32.totalorder %s50, %s64
      %p66 = scmp.eq.s32.totalorder %s19, 0
      %p67 = por %p65, %p66
      %s69 = sadd.s32 %s68, 1
      %p72 = scmp.eq.s32.totalorder %s13, 1
      %p73 = scmp.ne.s32.totalorder %s68, %s70
      %p74 = scmp.eq.s32.totalorder %s13, 0
      %p75 = por %p73, %p74
      %p76 = scmp.ne.s32.totalorder %s68, %s70
      %p77 = scmp.eq.s32.totalorder %s18, 1
      %p78 = por %p76, %p77
      %p79 = scmp.ne.s32.totalorder %s70, %s71
      %p80 = scmp.eq.s32.totalorder %s18, 0
      %p81 = por %p79, %p80
      %p82 = scmp.ne.s32.totalorder %s70, %s71
      %p83 = scmp.eq.s32.totalorder %s19, 1
      %p84 = por %p82, %p83
      %p86 = scmp.ne.s32.totalorder %s71, %s85
      %p87 = scmp.eq.s32.totalorder %s19, 0
      %p88 = por %p86, %p87
      %s90 = sadd.s32 %s89, 1
      %p93 = scmp.eq.s32.totalorder %s13, 1
      %p94 = scmp.ne.s32.totalorder %s89, %s91
      %p95 = scmp.eq.s32.totalorder %s13, 0
      %p96 = por %p94, %p95
      %p97 = scmp.ne.s32.totalorder %s89, %s91
      %p98 = scmp.eq.s32.totalorder %s18, 1
      %p99 = por %p97, %p98
      %p100 = scmp.ne.s32.totalorder %s91, %s92
      %p101 = scmp.eq.s32.totalorder %s18, 0
      %p102 = por %p100, %p101
      %p103 = scmp.ne.s32.totalorder %s91, %s92
      %p104 = scmp.eq.s32.totalorder %s19, 1
      %p105 = por %p103, %p104
      %p107 = scmp.ne.s32.totalorder %s92, %s106
      %p108 = scmp.eq.s32.totalorder %s19, 0
      %p109 = por %p107, %p108
      %s110 = ssub.s32 %s13, %s20
      %p111 = scmp.eq.s32.totalorder %s110, 0
      %s113 = sadd.s32 %s112, 1
      %s114 = scalar_select %p111, %s112, %s113
      %p117 = pneg %p111
      %p118 = scmp.eq.s32.totalorder %s13, 1
      %p119 = por %p117, %p118
      %p120 = scmp.ne.s32.totalorder %s112, %s115
      %p121 = scmp.eq.s32.totalorder %s13, 0
      %p122 = por %p120, %p121
      %p123 = scmp.ne.s32.totalorder %s112, %s115
      %p124 = scmp.eq.s32.totalorder %s18, 1
      %p125 = por %p123, %p124
      %p126 = scmp.ne.s32.totalorder %s115, %s116
      %p127 = scmp.eq.s32.totalorder %s18, 0
      %p128 = por %p126, %p127
      %p129 = scmp.ne.s32.totalorder %s115, %s116
      %p130 = scmp.eq.s32.totalorder %s19, 1
      %p131 = por %p129, %p130
      %p133 = scmp.ne.s32.totalorder %s116, %s132
      %p134 = scmp.eq.s32.totalorder %s19, 0
      %p135 = por %p133, %p134
      %s136 = ssub.s32 %s13, %s20
      %p137 = scmp.eq.s32.totalorder %s136, 0
      %s139 = sadd.s32 %s138, 1
      %s140 = scalar_select %p137, %s138, %s139
      %p143 = pneg %p137
      %p144 = scmp.eq.s32.totalorder %s13, 1
      %p145 = por %p143, %p144
      %p146 = scmp.ne.s32.totalorder %s138, %s141
      %p147 = scmp.eq.s32.totalorder %s13, 0
      %p148 = por %p146, %p147
      %p149 = scmp.ne.s32.totalorder %s138, %s141
      %p150 = scmp.eq.s32.totalorder %s18, 1
      %p151 = por %p149, %p150
      %p152 = scmp.ne.s32.totalorder %s141, %s142
      %p153 = scmp.eq.s32.totalorder %s18, 0
      %p154 = por %p152, %p153
      %p155 = scmp.ne.s32.totalorder %s141, %s142
      %p156 = scmp.eq.s32.totalorder %s19, 1
      %p157 = por %p155, %p156
      %p159 = scmp.ne.s32.totalorder %s142, %s158
      %p160 = scmp.eq.s32.totalorder %s19, 0
      %p161 = por %p159, %p160
      %s162 = ssub.s32 %s13, %s20
      %p163 = scmp.eq.s32.totalorder %s162, 0
      %s165 = sadd.s32 %s164, 1
      %s166 = scalar_select %p163, %s164, %s165
      %p169 = pneg %p163
      %p170 = scmp.eq.s32.totalorder %s13, 1
      %p171 = por %p169, %p170
      %p172 = scmp.ne.s32.totalorder %s164, %s167
      %p173 = scmp.eq.s32.totalorder %s13, 0
      %p174 = por %p172, %p173
      %p175 = scmp.ne.s32.totalorder %s164, %s167
      %p176 = scmp.eq.s32.totalorder %s18, 1
      %p177 = por %p175, %p176
      %p178 = scmp.ne.s32.totalorder %s167, %s168
      %p179 = scmp.eq.s32.totalorder %s18, 0
      %p180 = por %p178, %p179
      %p181 = scmp.ne.s32.totalorder %s167, %s168
      %p182 = scmp.eq.s32.totalorder %s19, 1
      %p183 = por %p181, %p182
      %p185 = scmp.ne.s32.totalorder %s168, %s184
      %p186 = scmp.eq.s32.totalorder %s19, 0
      %p187 = por %p185, %p186
      %p188 = scmp.le.s32.totalorder 1, %s13
      %p189 = scmp.lt.s32.totalorder %s13, 3
      %p190 = pnand %p188, %p189
      %p191 = pneg %p190
      // Predicated region
      $region9: #{convlstm_cell_forward.1} parent=5 // pred_check
        _
      $region10: #{convlstm_cell_forward.1} parent=5 // pred_check_branch
        %193 = sbr.rel (%p190) target = $region12
      $region11: #{convlstm_cell_forward.1} parent=5 // pred_region
        %s194 = ssub.s32 %s13, 1
        // Predicated region
        $region13: #{convlstm_cell_forward.1} parent=11 // pred_check
          %p195 = pneg %p60
        $region14: #{convlstm_cell_forward.1} parent=11 // pred_check_branch
          %197 = sbr.rel (%p195) target = $region16
        $region15: #{convlstm_cell_forward.1} parent=11 // pred_region
          _
        $region16: #{convlstm_cell_forward.1} parent=11 // pred_fallthru
          _
        // Predicated region
        $region17: #{convlstm_cell_forward.1} parent=11 // pred_check
          %p198 = pneg %p81
        $region18: #{convlstm_cell_forward.1} parent=11 // pred_check_branch
          %200 = sbr.rel (%p198) target = $region20
        $region19: #{convlstm_cell_forward.1} parent=11 // pred_region
          _
        $region20: #{convlstm_cell_forward.1} parent=11 // pred_fallthru
          _
        // Predicated region
        $region21: #{convlstm_cell_forward.1} parent=11 // pred_check
          %p201 = pneg %p102
        $region22: #{convlstm_cell_forward.1} parent=11 // pred_check_branch
          %203 = sbr.rel (%p201) target = $region24
        $region23: #{convlstm_cell_forward.1} parent=11 // pred_region
          _
        $region24: #{convlstm_cell_forward.1} parent=11 // pred_fallthru
          _
      $region12: #{convlstm_cell_forward.1} parent=5 // pred_fallthru
        _
      %p204 = scmp.lt.s32.totalorder %s13, 2
      // Predicated region
      $region25: #{convlstm_cell_forward.1} parent=5 // pred_check
        %p205 = pneg %p204
      $region26: #{convlstm_cell_forward.1} parent=5 // pred_check_branch
        %207 = sbr.rel (%p205) target = $region28
      $region27: #{convlstm_cell_forward.1} parent=5 // pred_region
        // Predicated region
        $region29: #{convlstm_cell_forward.1} parent=27 // pred_check
          %p208 = pneg %p33
        $region30: #{convlstm_cell_forward.1} parent=27 // pred_check_branch
          %210 = sbr.rel (%p208) target = $region32
        $region31: #{convlstm_cell_forward.1} parent=27 // pred_region
          %s211 = sand.u32 %s23, 1
          %s212 = sand.u32 %s23, 1
          %s213 = smul.addr %s212, 80
          %s214 = scalar_lea.vmem [#allocation2], %s213
          %s215 = smul.u32 2, %s13
          %s216 = smul.addr %s215, 8
          %s217 = scalar_lea.vmem %s0, %s216
          // Predicated region
          $region33: #{convlstm_cell_forward.1} parent=31 // pred_check
            _
          $region34: #{convlstm_cell_forward.1} parent=31 // pred_check_branch
            %219 = sbr.rel (0) target = $region36
          $region35: #{convlstm_cell_forward.1} parent=31 // pred_region
            // Predicated region
            $region37: #{convlstm_cell_forward.1} parent=35 // pred_check
              _
            $region38: #{convlstm_cell_forward.1} parent=35 // pred_check_branch
              %221 = sbr.rel (0) target = $region40
            $region39: #{convlstm_cell_forward.1} parent=35 // pred_region
              loop: start=0, step=1, limit=1
              $region41: #{convlstm_cell_forward.1} parent=39 // loop_pre_header
                _
              $region42: #{convlstm_cell_forward.1} parent=39 // loop_header
                %s223 = sphi 0, %s227
                %p224 = scmp.ge.s32.totalorder %s223, 1
                %s228 = sphi %s217, %s217
                %s229 = sphi %s214, %s214
              $region43: #{convlstm_cell_forward.1} parent=39 // loop_header_branch
                %226 = sbr.rel (%p224) target = $region47
              $region44: #{convlstm_cell_forward.1} parent=39 // loop_body
                %v230 = vld [vmem:[%s228] sm:$0xff]
                %231 = vst [vmem:[%s229] sm:$0xff] %v230
                %v232 = vld [vmem:[%s228 + $0x8] sm:$0xff]
                %233 = vst [vmem:[%s229 + $0x8] sm:$0xff] %v232
                %v234 = vld [vmem:[%s228 + $0x20] sm:$0xff]
                %235 = vst [vmem:[%s229 + $0x10] sm:$0xff] %v234
                %v236 = vld [vmem:[%s228 + $0x28] sm:$0xff]
                %237 = vst [vmem:[%s229 + $0x18] sm:$0xff] %v236
                %v238 = vld [vmem:[%s228 + $0x40] sm:$0xff]
                %239 = vst [vmem:[%s229 + $0x20] sm:$0xff] %v238
                %v240 = vld [vmem:[%s228 + $0x48] sm:$0xff]
                %241 = vst [vmem:[%s229 + $0x28] sm:$0xff] %v240
                %v242 = vld [vmem:[%s228 + $0x60] sm:$0xff]
                %243 = vst [vmem:[%s229 + $0x30] sm:$0xff] %v242
                %v244 = vld [vmem:[%s228 + $0x68] sm:$0xff]
                %245 = vst [vmem:[%s229 + $0x38] sm:$0xff] %v244
                %v246 = vld [vmem:[%s228 + $0x80] sm:$0xff]
                %247 = vst [vmem:[%s229 + $0x40] sm:$0xff] %v246
                %v248 = vld [vmem:[%s228 + $0x88] sm:$0xff]
                %249 = vst [vmem:[%s229 + $0x48] sm:$0xff] %v248
              $region45: #{convlstm_cell_forward.1} parent=39 // loop_footer
                %s227 = sadd.s32 1, %s223
              $region46: #{convlstm_cell_forward.1} parent=39 // loop_footer_branch
                %222 = sbr.rel target = $region42
              $region47: #{convlstm_cell_forward.1} parent=39 // loop_exit
                _
            $region40: #{convlstm_cell_forward.1} parent=35 // pred_fallthru
              _
            // Predicated region
            $region48: #{convlstm_cell_forward.1} parent=35 // pred_check
              _
            $region49: #{convlstm_cell_forward.1} parent=35 // pred_check_branch
              %251 = sbr.rel target = $region51
            $region50: #{convlstm_cell_forward.1} parent=35 // pred_region
              _
            $region51: #{convlstm_cell_forward.1} parent=35 // pred_fallthru
              _
          $region36: #{convlstm_cell_forward.1} parent=31 // pred_fallthru
            _
          %252 = vnop
        $region32: #{convlstm_cell_forward.1} parent=27 // pred_fallthru
          _
        // Predicated region
        $region52: #{convlstm_cell_forward.1} parent=27 // pred_check
          %p253 = pneg %p122
        $region53: #{convlstm_cell_forward.1} parent=27 // pred_check_branch
          %255 = sbr.rel (%p253) target = $region55
        $region54: #{convlstm_cell_forward.1} parent=27 // pred_region
          %s256 = sand.u32 %s112, 1
          %s257 = sand.u32 %s112, 1
          %s258 = smul.addr %s257, 64
          %s259 = scalar_lea.vmem [#allocation3], %s258
          %s260 = smul.u32 2, %s13
          %s261 = smul.addr %s260, 8
          %s262 = scalar_lea.vmem %s4, %s261
          // Predicated region
          $region56: #{convlstm_cell_forward.1} parent=54 // pred_check
            _
          $region57: #{convlstm_cell_forward.1} parent=54 // pred_check_branch
            %264 = sbr.rel (0) target = $region59
          $region58: #{convlstm_cell_forward.1} parent=54 // pred_region
            // Predicated region
            $region60: #{convlstm_cell_forward.1} parent=58 // pred_check
              _
            $region61: #{convlstm_cell_forward.1} parent=58 // pred_check_branch
              %266 = sbr.rel (0) target = $region63
            $region62: #{convlstm_cell_forward.1} parent=58 // pred_region
              loop: start=0, step=1, limit=1
              $region64: #{convlstm_cell_forward.1} parent=62 // loop_pre_header
                _
              $region65: #{convlstm_cell_forward.1} parent=62 // loop_header
                %s268 = sphi 0, %s272
                %p269 = scmp.ge.s32.totalorder %s268, 1
                %s273 = sphi %s262, %s262
                %s274 = sphi %s259, %s259
              $region66: #{convlstm_cell_forward.1} parent=62 // loop_header_branch
                %271 = sbr.rel (%p269) target = $region70
              $region67: #{convlstm_cell_forward.1} parent=62 // loop_body
                %v275 = vld [vmem:[%s273] sm:$0xff]
                %276 = vst [vmem:[%s274] sm:$0xff] %v275
                %v277 = vld [vmem:[%s273 + $0x8] sm:$0xff]
                %278 = vst [vmem:[%s274 + $0x8] sm:$0xff] %v277
                %v279 = vld [vmem:[%s273 + $0x20] sm:$0xff]
                %280 = vst [vmem:[%s274 + $0x10] sm:$0xff] %v279
                %v281 = vld [vmem:[%s273 + $0x28] sm:$0xff]
                %282 = vst [vmem:[%s274 + $0x18] sm:$0xff] %v281
                %v283 = vld [vmem:[%s273 + $0x40] sm:$0xff]
                %284 = vst [vmem:[%s274 + $0x20] sm:$0xff] %v283
                %v285 = vld [vmem:[%s273 + $0x48] sm:$0xff]
                %286 = vst [vmem:[%s274 + $0x28] sm:$0xff] %v285
                %v287 = vld [vmem:[%s273 + $0x60] sm:$0xff]
                %288 = vst [vmem:[%s274 + $0x30] sm:$0xff] %v287
                %v289 = vld [vmem:[%s273 + $0x68] sm:$0xff]
                %290 = vst [vmem:[%s274 + $0x38] sm:$0xff] %v289
              $region68: #{convlstm_cell_forward.1} parent=62 // loop_footer
                %s272 = sadd.s32 1, %s268
              $region69: #{convlstm_cell_forward.1} parent=62 // loop_footer_branch
                %267 = sbr.rel target = $region65
              $region70: #{convlstm_cell_forward.1} parent=62 // loop_exit
                _
            $region63: #{convlstm_cell_forward.1} parent=58 // pred_fallthru
              _
            // Predicated region
            $region71: #{convlstm_cell_forward.1} parent=58 // pred_check
              _
            $region72: #{convlstm_cell_forward.1} parent=58 // pred_check_branch
              %292 = sbr.rel target = $region74
            $region73: #{convlstm_cell_forward.1} parent=58 // pred_region
              _
            $region74: #{convlstm_cell_forward.1} parent=58 // pred_fallthru
              _
          $region59: #{convlstm_cell_forward.1} parent=54 // pred_fallthru
            _
          %293 = vnop
        $region55: #{convlstm_cell_forward.1} parent=27 // pred_fallthru
          _
      $region28: #{convlstm_cell_forward.1} parent=5 // pred_fallthru
        _
      %p294 = scmp.le.s32.totalorder 1, %s13
      %p295 = scmp.lt.s32.totalorder %s13, 3
      %p296 = pnand %p294, %p295
      %p297 = pneg %p296
      // Predicated region
      $region75: #{convlstm_cell_forward.1} parent=5 // pred_check
        _
      $region76: #{convlstm_cell_forward.1} parent=5 // pred_check_branch
        %299 = sbr.rel (%p296) target = $region78
      $region77: #{convlstm_cell_forward.1} parent=5 // pred_region
        %s300 = ssub.s32 %s13, 1
        %s301 = sand.u32 %s26, 1
        %s302 = sand.u32 %s26, 1
        %s303 = smul.addr %s302, 80
        %s304 = scalar_lea.vmem [#allocation2], %s303
        // Predicated region
        $region79: #{convlstm_cell_forward.1} parent=77 // pred_check
          %p305 = pneg %p39
        $region80: #{convlstm_cell_forward.1} parent=77 // pred_check_branch
          %307 = sbr.rel (%p305) target = $region82
        $region81: #{convlstm_cell_forward.1} parent=77 // pred_region
          _
        $region82: #{convlstm_cell_forward.1} parent=77 // pred_fallthru
          _
        %s308 = sand.u32 %s115, 1
        %s309 = sand.u32 %s115, 1
        %s310 = smul.addr %s309, 64
        %s311 = scalar_lea.vmem [#allocation3], %s310
        // Predicated region
        $region83: #{convlstm_cell_forward.1} parent=77 // pred_check
          %p312 = pneg %p128
        $region84: #{convlstm_cell_forward.1} parent=77 // pred_check_branch
          %314 = sbr.rel (%p312) target = $region86
        $region85: #{convlstm_cell_forward.1} parent=77 // pred_region
          _
        $region86: #{convlstm_cell_forward.1} parent=77 // pred_fallthru
          _
        %s315 = sand.u32 %s26, 1
        %s316 = sand.u32 %s26, 1
        %s317 = smul.addr %s316, 80
        %s318 = scalar_lea.vmem [#allocation2], %s317
        %p319 = pneg %p39
        %p320 = pneg %p36
        %p321 = pneg %p60
        %p322 = pneg %p57
        %p323 = pneg %p81
        %p324 = pneg %p78
        %p325 = pneg %p102
        %p326 = pneg %p99
        %s327 = sand.u32 %s115, 1
        %s328 = sand.u32 %s115, 1
        %s329 = smul.addr %s328, 64
        %s330 = scalar_lea.vmem [#allocation3], %s329
        %p331 = pneg %p128
        %p332 = pneg %p125
        %p333 = pneg %p154
        %p334 = pneg %p151
        %s335 = sand.u32 %s141, 1
        %s336 = sand.u32 %s141, 1
        %s337 = smul.addr %s336, 64
        %s338 = scalar_lea.vmem [#allocation4], %s337
        %p339 = pneg %p180
        %p340 = pneg %p177
        %s341 = sand.u32 %s167, 1
        %s342 = sand.u32 %s167, 1
        %s343 = smul.addr %s342, 64
        %s344 = scalar_lea.vmem [#allocation5], %s343
        %s345 = smul.u32 2, %s18
        %s346 = smul.u32 2, %s18
        %s347 = smul.u32 2, %s18
        %s348 = smul.u32 2, %s18
        %v350 = vld [vmem:[%s304] sm:$0xff]
        %v351 = vld [vmem:[%s304 + $0x8] sm:$0xff]
        %v352 = vld [vmem:[%s304 + $0x10] sm:$0xff]
        %v353 = vld [vmem:[%s304 + $0x18] sm:$0xff]
        %v354 = vld [vmem:[%s304 + $0x20] sm:$0xff]
        %v355 = vld [vmem:[%s304 + $0x28] sm:$0xff]
        %v356 = vld [vmem:[%s304 + $0x30] sm:$0xff]
        %v357 = vld [vmem:[%s304 + $0x38] sm:$0xff]
        %v358 = vld [vmem:[%s304 + $0x40] sm:$0xff]
        %v359 = vld [vmem:[%s304 + $0x48] sm:$0xff]
        %360 = vrot.lane.b32.xlu0 %v350, 17
        %v361 = vpop.permute.xlu0 %360
        %362 = vrot.lane.b32.xlu0 %v352, 17
        %v363 = vpop.permute.xlu0 %362
        %364 = vrot.lane.b32.xlu0 %v354, 17
        %v365 = vpop.permute.xlu0 %364
        %366 = vrot.lane.b32.xlu0 %v356, 17
        %v367 = vpop.permute.xlu0 %366
        %368 = vrot.lane.b32.xlu0 %v358, 17
        %v369 = vpop.permute.xlu0 %368
        %370 = vrot.lane.b32.xlu0 %v351, 17
        %v371 = vpop.permute.xlu0 %370
        %372 = vrot.lane.b32.xlu0 %v353, 17
        %v373 = vpop.permute.xlu0 %372
        %374 = vrot.lane.b32.xlu0 %v355, 17
        %v375 = vpop.permute.xlu0 %374
        %376 = vrot.lane.b32.xlu0 %v357, 17
        %v377 = vpop.permute.xlu0 %376
        %378 = vrot.lane.b32.xlu0 %v359, 17
        %v379 = vpop.permute.xlu0 %378
        %v380 = vlaneseq
        %v381 = vand.u32 %v380, 127
        %vm382 = vcmp.lt.s32.totalorder %v381, 17
        %v383 = vsel %vm382, %v361, %v371
        %v384 = vsel %vm382, %v363, %v373
        %v385 = vsel %vm382, %v365, %v375
        %v386 = vsel %vm382, %v367, %v377
        %v387 = vsel %vm382, %v369, %v379
        %v388 = vsel %vm382, %v371, %v361
        %v389 = vsel %vm382, %v373, %v363
        %v390 = vsel %vm382, %v375, %v365
        %v391 = vsel %vm382, %v377, %v367
        %v392 = vsel %vm382, %v379, %v369
        %v393 = vld [vmem:[%s3] ss:$8 sm:$0x3]
        %v395 = vlaneseq
        %v396 = vshrl.u32 %v395, 7
        %v397 = vsub.s32 0, %v396
        %v398 = vrot.slane %v393, %v397
        %v399 = vlaneseq
        %v400 = vshrl.u32 %v399, 7
        %v401 = vsub.s32 1, %v400
        %v402 = vrot.slane %v393, %v401
        %v405 = vmul.f32 %v388, %v398
        %v406 = vmul.f32 %v383, %v402
        %v407 = vmul.f32 %v389, %v398
        %v408 = vmul.f32 %v384, %v402
        %v409 = vmul.f32 %v390, %v398
        %v410 = vmul.f32 %v385, %v402
        %v411 = vmul.f32 %v391, %v398
        %v412 = vmul.f32 %v386, %v402
        %v413 = vmul.f32 %v392, %v398
        %v414 = vmul.f32 %v387, %v402
        %415 = vrot.lane.b32.xlu0 %v350, 16
        %v416 = vpop.permute.xlu0 %415
        %417 = vrot.lane.b32.xlu0 %v352, 16
        %v418 = vpop.permute.xlu0 %417
        %419 = vrot.lane.b32.xlu0 %v354, 16
        %v420 = vpop.permute.xlu0 %419
        %421 = vrot.lane.b32.xlu0 %v356, 16
        %v422 = vpop.permute.xlu0 %421
        %423 = vrot.lane.b32.xlu0 %v358, 16
        %v424 = vpop.permute.xlu0 %423
        %425 = vrot.lane.b32.xlu0 %v351, 16
        %v426 = vpop.permute.xlu0 %425
        %427 = vrot.lane.b32.xlu0 %v353, 16
        %v428 = vpop.permute.xlu0 %427
        %429 = vrot.lane.b32.xlu0 %v355, 16
        %v430 = vpop.permute.xlu0 %429
        %431 = vrot.lane.b32.xlu0 %v357, 16
        %v432 = vpop.permute.xlu0 %431
        %433 = vrot.lane.b32.xlu0 %v359, 16
        %v434 = vpop.permute.xlu0 %433
        %vm435 = vcmp.lt.s32.totalorder %v381, 16
        %v436 = vsel %vm435, %v416, %v426
        %v437 = vsel %vm435, %v418, %v428
        %v438 = vsel %vm435, %v420, %v430
        %v439 = vsel %vm435, %v422, %v432
        %v440 = vsel %vm435, %v424, %v434
        %v441 = vsel %vm435, %v426, %v416
        %v442 = vsel %vm435, %v428, %v418
        %v443 = vsel %vm435, %v430, %v420
        %v444 = vsel %vm435, %v432, %v422
        %v445 = vsel %vm435, %v434, %v424
        %s446 = scalar_lea.vmem %s3, 1
        %v447 = vld [vmem:[%s446] ss:$8 sm:$0x3]
        %v449 = vlaneseq
        %v450 = vshrl.u32 %v449, 7
        %v451 = vsub.s32 0, %v450
        %v452 = vrot.slane %v447, %v451
        %v453 = vlaneseq
        %v454 = vshrl.u32 %v453, 7
        %v455 = vsub.s32 1, %v454
        %v456 = vrot.slane %v447, %v455
        %v459 = vmul.f32 %v441, %v452
        %v460 = vmul.f32 %v436, %v456
        %v461 = vmul.f32 %v442, %v452
        %v462 = vmul.f32 %v437, %v456
        %v463 = vmul.f32 %v443, %v452
        %v464 = vmul.f32 %v438, %v456
        %v465 = vmul.f32 %v444, %v452
        %v466 = vmul.f32 %v439, %v456
        %v467 = vmul.f32 %v445, %v452
        %v468 = vmul.f32 %v440, %v456
        %469 = vrot.lane.b32.xlu0 %v350, 15
        %v470 = vpop.permute.xlu0 %469
        %471 = vrot.lane.b32.xlu0 %v352, 15
        %v472 = vpop.permute.xlu0 %471
        %473 = vrot.lane.b32.xlu0 %v354, 15
        %v474 = vpop.permute.xlu0 %473
        %475 = vrot.lane.b32.xlu0 %v356, 15
        %v476 = vpop.permute.xlu0 %475
        %477 = vrot.lane.b32.xlu0 %v358, 15
        %v478 = vpop.permute.xlu0 %477
        %479 = vrot.lane.b32.xlu0 %v351, 15
        %v480 = vpop.permute.xlu0 %479
        %481 = vrot.lane.b32.xlu0 %v353, 15
        %v482 = vpop.permute.xlu0 %481
        %483 = vrot.lane.b32.xlu0 %v355, 15
        %v484 = vpop.permute.xlu0 %483
        %485 = vrot.lane.b32.xlu0 %v357, 15
        %v486 = vpop.permute.xlu0 %485
        %487 = vrot.lane.b32.xlu0 %v359, 15
        %v488 = vpop.permute.xlu0 %487
        %vm489 = vcmp.lt.s32.totalorder %v381, 15
        %v490 = vsel %vm489, %v470, %v480
        %v491 = vsel %vm489, %v472, %v482
        %v492 = vsel %vm489, %v474, %v484
        %v493 = vsel %vm489, %v476, %v486
        %v494 = vsel %vm489, %v478, %v488
        %v495 = vsel %vm489, %v480, %v470
        %v496 = vsel %vm489, %v482, %v472
        %v497 = vsel %vm489, %v484, %v474
        %v498 = vsel %vm489, %v486, %v476
        %v499 = vsel %vm489, %v488, %v478
        %s500 = scalar_lea.vmem %s3, 2
        %v501 = vld [vmem:[%s500] ss:$8 sm:$0x3]
        %v503 = vlaneseq
        %v504 = vshrl.u32 %v503, 7
        %v505 = vsub.s32 0, %v504
        %v506 = vrot.slane %v501, %v505
        %v507 = vlaneseq
        %v508 = vshrl.u32 %v507, 7
        %v509 = vsub.s32 1, %v508
        %v510 = vrot.slane %v501, %v509
        %v513 = vmul.f32 %v495, %v506
        %v514 = vmul.f32 %v490, %v510
        %v515 = vmul.f32 %v496, %v506
        %v516 = vmul.f32 %v491, %v510
        %v517 = vmul.f32 %v497, %v506
        %v518 = vmul.f32 %v492, %v510
        %v519 = vmul.f32 %v498, %v506
        %v520 = vmul.f32 %v493, %v510
        %v521 = vmul.f32 %v499, %v506
        %v522 = vmul.f32 %v494, %v510
        %523 = vrot.lane.b32.xlu0 %v350, 1
        %v524 = vpop.permute.xlu0 %523
        %525 = vrot.lane.b32.xlu0 %v352, 1
        %v526 = vpop.permute.xlu0 %525
        %527 = vrot.lane.b32.xlu0 %v354, 1
        %v528 = vpop.permute.xlu0 %527
        %529 = vrot.lane.b32.xlu0 %v356, 1
        %v530 = vpop.permute.xlu0 %529
        %531 = vrot.lane.b32.xlu0 %v358, 1
        %v532 = vpop.permute.xlu0 %531
        %533 = vrot.lane.b32.xlu0 %v351, 1
        %v534 = vpop.permute.xlu0 %533
        %535 = vrot.lane.b32.xlu0 %v353, 1
        %v536 = vpop.permute.xlu0 %535
        %537 = vrot.lane.b32.xlu0 %v355, 1
        %v538 = vpop.permute.xlu0 %537
        %539 = vrot.lane.b32.xlu0 %v357, 1
        %v540 = vpop.permute.xlu0 %539
        %541 = vrot.lane.b32.xlu0 %v359, 1
        %v542 = vpop.permute.xlu0 %541
        %vm543 = vcmp.lt.s32.totalorder %v381, 1
        %v544 = vsel %vm543, %v524, %v534
        %v545 = vsel %vm543, %v526, %v536
        %v546 = vsel %vm543, %v528, %v538
        %v547 = vsel %vm543, %v530, %v540
        %v548 = vsel %vm543, %v532, %v542
        %v549 = vsel %vm543, %v534, %v524
        %v550 = vsel %vm543, %v536, %v526
        %v551 = vsel %vm543, %v538, %v528
        %v552 = vsel %vm543, %v540, %v530
        %v553 = vsel %vm543, %v542, %v532
        %s554 = scalar_lea.vmem %s3, 3
        %v555 = vld [vmem:[%s554] ss:$8 sm:$0x3]
        %v557 = vlaneseq
        %v558 = vshrl.u32 %v557, 7
        %v559 = vsub.s32 0, %v558
        %v560 = vrot.slane %v555, %v559
        %v561 = vlaneseq
        %v562 = vshrl.u32 %v561, 7
        %v563 = vsub.s32 1, %v562
        %v564 = vrot.slane %v555, %v563
        %v567 = vmul.f32 %v549, %v560
        %v568 = vmul.f32 %v544, %v564
        %v569 = vmul.f32 %v550, %v560
        %v570 = vmul.f32 %v545, %v564
        %v571 = vmul.f32 %v551, %v560
        %v572 = vmul.f32 %v546, %v564
        %v573 = vmul.f32 %v552, %v560
        %v574 = vmul.f32 %v547, %v564
        %v575 = vmul.f32 %v553, %v560
        %v576 = vmul.f32 %v548, %v564
        %577 = vrot.lane.b32.xlu0 %v350, 127
        %v578 = vpop.permute.xlu0 %577
        %579 = vrot.lane.b32.xlu0 %v352, 127
        %v580 = vpop.permute.xlu0 %579
        %581 = vrot.lane.b32.xlu0 %v354, 127
        %v582 = vpop.permute.xlu0 %581
        %583 = vrot.lane.b32.xlu0 %v356, 127
        %v584 = vpop.permute.xlu0 %583
        %585 = vrot.lane.b32.xlu0 %v358, 127
        %v586 = vpop.permute.xlu0 %585
        %587 = vrot.lane.b32.xlu0 %v351, 127
        %v588 = vpop.permute.xlu0 %587
        %589 = vrot.lane.b32.xlu0 %v353, 127
        %v590 = vpop.permute.xlu0 %589
        %591 = vrot.lane.b32.xlu0 %v355, 127
        %v592 = vpop.permute.xlu0 %591
        %593 = vrot.lane.b32.xlu0 %v357, 127
        %v594 = vpop.permute.xlu0 %593
        %595 = vrot.lane.b32.xlu0 %v359, 127
        %v596 = vpop.permute.xlu0 %595
        %vm597 = vcmp.lt.s32.totalorder %v381, 127
        %v598 = vsel %vm597, %v578, %v588
        %v599 = vsel %vm597, %v580, %v590
        %v600 = vsel %vm597, %v582, %v592
        %v601 = vsel %vm597, %v584, %v594
        %v602 = vsel %vm597, %v586, %v596
        %v603 = vsel %vm597, %v588, %v578
        %v604 = vsel %vm597, %v590, %v580
        %v605 = vsel %vm597, %v592, %v582
        %v606 = vsel %vm597, %v594, %v584
        %v607 = vsel %vm597, %v596, %v586
        %s608 = scalar_lea.vmem %s3, 5
        %v609 = vld [vmem:[%s608] ss:$8 sm:$0x3]
        %v611 = vlaneseq
        %v612 = vshrl.u32 %v611, 7
        %v613 = vsub.s32 0, %v612
        %v614 = vrot.slane %v609, %v613
        %v615 = vlaneseq
        %v616 = vshrl.u32 %v615, 7
        %v617 = vsub.s32 1, %v616
        %v618 = vrot.slane %v609, %v617
        %v621 = vmul.f32 %v598, %v614
        %v622 = vmul.f32 %v603, %v618
        %v623 = vmul.f32 %v599, %v614
        %v624 = vmul.f32 %v604, %v618
        %v625 = vmul.f32 %v600, %v614
        %v626 = vmul.f32 %v605, %v618
        %v627 = vmul.f32 %v601, %v614
        %v628 = vmul.f32 %v606, %v618
        %v629 = vmul.f32 %v602, %v614
        %v630 = vmul.f32 %v607, %v618
        %631 = vrot.lane.b32.xlu0 %v350, 113
        %v632 = vpop.permute.xlu0 %631
        %633 = vrot.lane.b32.xlu0 %v352, 113
        %v634 = vpop.permute.xlu0 %633
        %635 = vrot.lane.b32.xlu0 %v354, 113
        %v636 = vpop.permute.xlu0 %635
        %637 = vrot.lane.b32.xlu0 %v356, 113
        %v638 = vpop.permute.xlu0 %637
        %639 = vrot.lane.b32.xlu0 %v358, 113
        %v640 = vpop.permute.xlu0 %639
        %641 = vrot.lane.b32.xlu0 %v351, 113
        %v642 = vpop.permute.xlu0 %641
        %643 = vrot.lane.b32.xlu0 %v353, 113
        %v644 = vpop.permute.xlu0 %643
        %645 = vrot.lane.b32.xlu0 %v355, 113
        %v646 = vpop.permute.xlu0 %645
        %647 = vrot.lane.b32.xlu0 %v357, 113
        %v648 = vpop.permute.xlu0 %647
        %649 = vrot.lane.b32.xlu0 %v359, 113
        %v650 = vpop.permute.xlu0 %649
        %vm651 = vcmp.lt.s32.totalorder %v381, 113
        %v652 = vsel %vm651, %v632, %v642
        %v653 = vsel %vm651, %v634, %v644
        %v654 = vsel %vm651, %v636, %v646
        %v655 = vsel %vm651, %v638, %v648
        %v656 = vsel %vm651, %v640, %v650
        %v657 = vsel %vm651, %v642, %v632
        %v658 = vsel %vm651, %v644, %v634
        %v659 = vsel %vm651, %v646, %v636
        %v660 = vsel %vm651, %v648, %v638
        %v661 = vsel %vm651, %v650, %v640
        %s662 = scalar_lea.vmem %s3, 6
        %v663 = vld [vmem:[%s662] ss:$8 sm:$0x3]
        %v665 = vlaneseq
        %v666 = vshrl.u32 %v665, 7
        %v667 = vsub.s32 0, %v666
        %v668 = vrot.slane %v663, %v667
        %v669 = vlaneseq
        %v670 = vshrl.u32 %v669, 7
        %v671 = vsub.s32 1, %v670
        %v672 = vrot.slane %v663, %v671
        %v675 = vmul.f32 %v652, %v668
        %v676 = vmul.f32 %v657, %v672
        %v677 = vmul.f32 %v653, %v668
        %v678 = vmul.f32 %v658, %v672
        %v679 = vmul.f32 %v654, %v668
        %v680 = vmul.f32 %v659, %v672
        %v681 = vmul.f32 %v655, %v668
        %v682 = vmul.f32 %v660, %v672
        %v683 = vmul.f32 %v656, %v668
        %v684 = vmul.f32 %v661, %v672
        %685 = vrot.lane.b32.xlu0 %v350, 112
        %v686 = vpop.permute.xlu0 %685
        %687 = vrot.lane.b32.xlu0 %v352, 112
        %v688 = vpop.permute.xlu0 %687
        %689 = vrot.lane.b32.xlu0 %v354, 112
        %v690 = vpop.permute.xlu0 %689
        %691 = vrot.lane.b32.xlu0 %v356, 112
        %v692 = vpop.permute.xlu0 %691
        %693 = vrot.lane.b32.xlu0 %v358, 112
        %v694 = vpop.permute.xlu0 %693
        %695 = vrot.lane.b32.xlu0 %v351, 112
        %v696 = vpop.permute.xlu0 %695
        %697 = vrot.lane.b32.xlu0 %v353, 112
        %v698 = vpop.permute.xlu0 %697
        %699 = vrot.lane.b32.xlu0 %v355, 112
        %v700 = vpop.permute.xlu0 %699
        %701 = vrot.lane.b32.xlu0 %v357, 112
        %v702 = vpop.permute.xlu0 %701
        %703 = vrot.lane.b32.xlu0 %v359, 112
        %v704 = vpop.permute.xlu0 %703
        %vm705 = vcmp.lt.s32.totalorder %v381, 112
        %v706 = vsel %vm705, %v686, %v696
        %v707 = vsel %vm705, %v688, %v698
        %v708 = vsel %vm705, %v690, %v700
        %v709 = vsel %vm705, %v692, %v702
        %v710 = vsel %vm705, %v694, %v704
        %v711 = vsel %vm705, %v696, %v686
        %v712 = vsel %vm705, %v698, %v688
        %v713 = vsel %vm705, %v700, %v690
        %v714 = vsel %vm705, %v702, %v692
        %v715 = vsel %vm705, %v704, %v694
        %s716 = scalar_lea.vmem %s3, 7
        %v717 = vld [vmem:[%s716] ss:$8 sm:$0x3]
        %v719 = vlaneseq
        %v720 = vshrl.u32 %v719, 7
        %v721 = vsub.s32 0, %v720
        %v722 = vrot.slane %v717, %v721
        %v723 = vlaneseq
        %v724 = vshrl.u32 %v723, 7
        %v725 = vsub.s32 1, %v724
        %v726 = vrot.slane %v717, %v725
        %v729 = vmul.f32 %v706, %v722
        %v730 = vmul.f32 %v711, %v726
        %v731 = vmul.f32 %v707, %v722
        %v732 = vmul.f32 %v712, %v726
        %v733 = vmul.f32 %v708, %v722
        %v734 = vmul.f32 %v713, %v726
        %v735 = vmul.f32 %v709, %v722
        %v736 = vmul.f32 %v714, %v726
        %v737 = vmul.f32 %v710, %v722
        %v738 = vmul.f32 %v715, %v726
        %739 = vrot.lane.b32.xlu0 %v350, 111
        %v740 = vpop.permute.xlu0 %739
        %741 = vrot.lane.b32.xlu0 %v352, 111
        %v742 = vpop.permute.xlu0 %741
        %743 = vrot.lane.b32.xlu0 %v354, 111
        %v744 = vpop.permute.xlu0 %743
        %745 = vrot.lane.b32.xlu0 %v356, 111
        %v746 = vpop.permute.xlu0 %745
        %747 = vrot.lane.b32.xlu0 %v358, 111
        %v748 = vpop.permute.xlu0 %747
        %749 = vrot.lane.b32.xlu0 %v351, 111
        %v750 = vpop.permute.xlu0 %749
        %751 = vrot.lane.b32.xlu0 %v353, 111
        %v752 = vpop.permute.xlu0 %751
        %753 = vrot.lane.b32.xlu0 %v355, 111
        %v754 = vpop.permute.xlu0 %753
        %755 = vrot.lane.b32.xlu0 %v357, 111
        %v756 = vpop.permute.xlu0 %755
        %757 = vrot.lane.b32.xlu0 %v359, 111
        %v758 = vpop.permute.xlu0 %757
        %vm759 = vcmp.lt.s32.totalorder %v381, 111
        %v760 = vsel %vm759, %v740, %v750
        %v761 = vsel %vm759, %v742, %v752
        %v762 = vsel %vm759, %v744, %v754
        %v763 = vsel %vm759, %v746, %v756
        %v764 = vsel %vm759, %v748, %v758
        %v765 = vsel %vm759, %v750, %v740
        %v766 = vsel %vm759, %v752, %v742
        %v767 = vsel %vm759, %v754, %v744
        %v768 = vsel %vm759, %v756, %v746
        %v769 = vsel %vm759, %v758, %v748
        %s770 = scalar_lea.vmem %s3, 16
        %v771 = vld [vmem:[%s770] ss:$8 sm:$0x3]
        %v773 = vlaneseq
        %v774 = vshrl.u32 %v773, 7
        %v775 = vsub.s32 0, %v774
        %v776 = vrot.slane %v771, %v775
        %v777 = vlaneseq
        %v778 = vshrl.u32 %v777, 7
        %v779 = vsub.s32 1, %v778
        %v780 = vrot.slane %v771, %v779
        %v783 = vmul.f32 %v760, %v776
        %v784 = vmul.f32 %v765, %v780
        %v785 = vmul.f32 %v761, %v776
        %v786 = vmul.f32 %v766, %v780
        %v787 = vmul.f32 %v762, %v776
        %v788 = vmul.f32 %v767, %v780
        %v789 = vmul.f32 %v763, %v776
        %v790 = vmul.f32 %v768, %v780
        %v791 = vmul.f32 %v764, %v776
        %v792 = vmul.f32 %v769, %v780
        %v793 = vpack.c.bf16 %v407, %v405
        %v794 = vpack.c.bf16 %v408, %v406
        %v795 = vpack.c.bf16 %v411, %v409
        %v796 = vpack.c.bf16 %v412, %v410
        %v797 = vpack.c.bf16 %v459, %v413
        %v798 = vpack.c.bf16 %v460, %v414
        %v799 = vpack.c.bf16 %v463, %v461
        %v800 = vpack.c.bf16 %v464, %v462
        %v801 = vpack.c.bf16 %v467, %v465
        %v802 = vpack.c.bf16 %v468, %v466
        %v803 = vpack.c.bf16 %v515, %v513
        %v804 = vpack.c.bf16 %v516, %v514
        %v805 = vpack.c.bf16 %v519, %v517
        %v806 = vpack.c.bf16 %v520, %v518
        %v807 = vpack.c.bf16 %v567, %v521
        %v808 = vpack.c.bf16 %v568, %v522
        %v809 = vpack.c.bf16 %v571, %v569
        %v810 = vpack.c.bf16 %v572, %v570
        %v811 = vpack.c.bf16 %v575, %v573
        %v812 = vpack.c.bf16 %v576, %v574
        %v813 = vpack.c.bf16 %v352, %v350
        %v814 = vpack.c.bf16 %v353, %v351
        %v815 = vpack.c.bf16 %v356, %v354
        %v816 = vpack.c.bf16 %v357, %v355
        %v817 = vpack.c.bf16 %v621, %v358
        %v818 = vpack.c.bf16 %v622, %v359
        %v819 = vpack.c.bf16 %v625, %v623
        %v820 = vpack.c.bf16 %v626, %v624
        %v821 = vpack.c.bf16 %v629, %v627
        %v822 = vpack.c.bf16 %v630, %v628
        %v823 = vpack.c.bf16 %v677, %v675
        %v824 = vpack.c.bf16 %v678, %v676
        %v825 = vpack.c.bf16 %v681, %v679
        %v826 = vpack.c.bf16 %v682, %v680
        %v827 = vpack.c.bf16 %v729, %v683
        %v828 = vpack.c.bf16 %v730, %v684
        %v829 = vpack.c.bf16 %v733, %v731
        %v830 = vpack.c.bf16 %v734, %v732
        %v831 = vpack.c.bf16 %v737, %v735
        %v832 = vpack.c.bf16 %v738, %v736
        %v833 = vpack.c.bf16 %v785, %v783
        %v834 = vpack.c.bf16 %v786, %v784
        %v835 = vpack.c.bf16 %v789, %v787
        %v836 = vpack.c.bf16 %v790, %v788
        %v837 = vpack.c.bf16 %v791, %v791
        %v838 = vpack.c.bf16 %v792, %v792
        %v839 = vld [vmem:[%s1] sm:$0xff]
        %v840 = vld [vmem:[%s1 + $0x8] sm:$0xf]
        %v841 = vld [vmem:[%s1 + $0xc] sm:$0xff]
        %v842 = vld [vmem:[%s1 + $0x14] sm:$0xf]
        %v843 = vld [vmem:[%s1 + $0x18] sm:$0xff]
        %v844 = vld [vmem:[%s1 + $0x20] sm:$0xf]
        %v845 = vld [vmem:[%s1 + $0x24] sm:$0xff]
        %v846 = vld [vmem:[%s1 + $0x2c] sm:$0xf]
        %v847 = vld [vmem:[%s1 + $0x30] sm:$0xff]
        %v848 = vld [vmem:[%s1 + $0x38] sm:$0xf]
        %v849 = vld [vmem:[%s1 + $0x3c] sm:$0xff]
        %v850 = vld [vmem:[%s1 + $0x44] sm:$0xf]
        %v851 = vld [vmem:[%s1 + $0x48] sm:$0xff]
        %v852 = vld [vmem:[%s1 + $0x50] sm:$0xf]
        %v853 = vld [vmem:[%s1 + $0x54] sm:$0xff]
        %v854 = vld [vmem:[%s1 + $0x5c] sm:$0xf]
        %v855 = vld [vmem:[%s1 + $0x60] sm:$0xff]
        %v856 = vld [vmem:[%s1 + $0x68] sm:$0xf]
        %v857 = vld [vmem:[%s1 + $0x6c] sm:$0xff]
        %v858 = vld [vmem:[%s1 + $0x74] sm:$0xf]
        %v859 = vld [vmem:[%s1 + $0x78] sm:$0xff]
        %v860 = vld [vmem:[%s1 + $0x80] sm:$0xf]
        %v861 = vld [vmem:[%s1 + $0x84] sm:$0xff]
        %v862 = vld [vmem:[%s1 + $0x8c] sm:$0xf]
        %v863 = vld [vmem:[%s1 + $0x90] sm:$0xff]
        %v864 = vld [vmem:[%s1 + $0x98] sm:$0xf]
        %v865 = vld [vmem:[%s1 + $0x9c] sm:$0xff]
        %v866 = vld [vmem:[%s1 + $0xa4] sm:$0xf]
        %v867 = vld [vmem:[%s1 + $0xa8] sm:$0xff]
        %v868 = vld [vmem:[%s1 + $0xb0] sm:$0xf]
        %v869 = vld [vmem:[%s1 + $0xb4] sm:$0xff]
        %v870 = vld [vmem:[%s1 + $0xbc] sm:$0xf]
        %v871 = vld [vmem:[%s2] sm:$0xff]
        %v872 = vld [vmem:[%s2 + $0x8] sm:$0xff]
        %v873 = vld [vmem:[%s2 + $0x10] sm:$0xff]
        %v874 = vld [vmem:[%s2 + $0x18] sm:$0xff]
        %v875 = vld [vmem:[%s2 + $0x20] sm:$0xff]
        %v876 = vld [vmem:[%s2 + $0x28] sm:$0xff]
        %v877 = vld [vmem:[%s2 + $0x30] sm:$0xff]
        %v878 = vld [vmem:[%s2 + $0x38] sm:$0xff]
        %v879 = vld [vmem:[%s2 + $0x40] sm:$0xff]
        %v880 = vld [vmem:[%s2 + $0x48] sm:$0xff]
        %v881 = vld [vmem:[%s2 + $0x50] sm:$0xff]
        %v882 = vld [vmem:[%s2 + $0x58] sm:$0xff]
        %v883 = vld [vmem:[%s2 + $0x60] sm:$0xff]
        %v884 = vld [vmem:[%s2 + $0x68] sm:$0xff]
        %v885 = vld [vmem:[%s2 + $0x70] sm:$0xff]
        %v886 = vld [vmem:[%s2 + $0x78] sm:$0xff]
        %888 = vset.pattern.permute.xlu0 0
        %889 = vperm.xlu0 %888, %v871
        %v890 = vpop.permute.xlu0 %889
        %893 = vset.pattern.permute.xlu0 0
        %894 = vperm.xlu0 %893, %v872
        %v895 = vpop.permute.xlu0 %894
        %898 = vset.pattern.permute.xlu0 0
        %899 = vperm.xlu0 %898, %v873
        %v900 = vpop.permute.xlu0 %899
        %903 = vset.pattern.permute.xlu0 0
        %904 = vperm.xlu0 %903, %v874
        %v905 = vpop.permute.xlu0 %904
        %908 = vset.pattern.permute.xlu0 0
        %909 = vperm.xlu0 %908, %v875
        %v910 = vpop.permute.xlu0 %909
        %913 = vset.pattern.permute.xlu0 0
        %914 = vperm.xlu0 %913, %v876
        %v915 = vpop.permute.xlu0 %914
        %918 = vset.pattern.permute.xlu0 0
        %919 = vperm.xlu0 %918, %v877
        %v920 = vpop.permute.xlu0 %919
        %923 = vset.pattern.permute.xlu0 0
        %924 = vperm.xlu0 %923, %v878
        %v925 = vpop.permute.xlu0 %924
        %928 = vset.pattern.permute.xlu0 0
        %929 = vperm.xlu0 %928, %v879
        %v930 = vpop.permute.xlu0 %929
        %933 = vset.pattern.permute.xlu0 0
        %934 = vperm.xlu0 %933, %v880
        %v935 = vpop.permute.xlu0 %934
        %938 = vset.pattern.permute.xlu0 0
        %939 = vperm.xlu0 %938, %v881
        %v940 = vpop.permute.xlu0 %939
        %943 = vset.pattern.permute.xlu0 0
        %944 = vperm.xlu0 %943, %v882
        %v945 = vpop.permute.xlu0 %944
        %948 = vset.pattern.permute.xlu0 0
        %949 = vperm.xlu0 %948, %v883
        %v950 = vpop.permute.xlu0 %949
        %953 = vset.pattern.permute.xlu0 0
        %954 = vperm.xlu0 %953, %v884
        %v955 = vpop.permute.xlu0 %954
        %958 = vset.pattern.permute.xlu0 0
        %959 = vperm.xlu0 %958, %v885
        %v960 = vpop.permute.xlu0 %959
        %963 = vset.pattern.permute.xlu0 0
        %964 = vperm.xlu0 %963, %v886
        %v965 = vpop.permute.xlu0 %964
        %v999 = vunpack.c.l.b16 %v839
        %v1000 = vunpack.c.h.b16 %v839
        %v1001 = vunpack.c.l.b16 %v840
        %v1002 = vunpack.c.l.b16 %v841
        %v1003 = vunpack.c.h.b16 %v841
        %v1004 = vunpack.c.l.b16 %v842
        %v1005 = vunpack.c.l.b16 %v843
        %v1006 = vunpack.c.h.b16 %v843
        %v1007 = vunpack.c.l.b16 %v844
        %v1008 = vunpack.c.l.b16 %v845
        %v1009 = vunpack.c.h.b16 %v845
        %v1010 = vunpack.c.l.b16 %v846
        %v1011 = vunpack.c.l.b16 %v847
        %v1012 = vunpack.c.h.b16 %v847
        %v1013 = vunpack.c.l.b16 %v848
        %v1014 = vunpack.c.l.b16 %v849
        %v1015 = vunpack.c.h.b16 %v849
        %v1016 = vunpack.c.l.b16 %v850
        %v1017 = vunpack.c.l.b16 %v851
        %v1018 = vunpack.c.h.b16 %v851
        %v1019 = vunpack.c.l.b16 %v852
        %v1020 = vunpack.c.l.b16 %v853
        %v1021 = vunpack.c.h.b16 %v853
        %v1022 = vunpack.c.l.b16 %v854
        %v1023 = vunpack.c.l.b16 %v855
        %v1024 = vunpack.c.h.b16 %v855
        %v1025 = vunpack.c.l.b16 %v856
        %v1026 = vunpack.c.l.b16 %v857
        %v1027 = vunpack.c.h.b16 %v857
        %v1028 = vunpack.c.l.b16 %v858
        %v1029 = vunpack.c.l.b16 %v859
        %v1030 = vunpack.c.h.b16 %v859
        %v1031 = vunpack.c.l.b16 %v860
        %v1032 = vunpack.c.l.b16 %v861
        %v1033 = vunpack.c.h.b16 %v861
        %v1034 = vunpack.c.l.b16 %v862
        %v1035 = vunpack.c.l.b16 %v863
        %v1036 = vunpack.c.h.b16 %v863
        %v1037 = vunpack.c.l.b16 %v864
        %v1038 = vunpack.c.l.b16 %v865
        %v1039 = vunpack.c.h.b16 %v865
        %v1040 = vunpack.c.l.b16 %v866
        %v1041 = vunpack.c.l.b16 %v867
        %v1042 = vunpack.c.h.b16 %v867
        %v1043 = vunpack.c.l.b16 %v868
        %v1044 = vunpack.c.l.b16 %v869
        %v1045 = vunpack.c.h.b16 %v869
        %v1046 = vunpack.c.l.b16 %v870
        %v1047 = vpack.c.b16 %v1002, %v999
        %v1048 = vpack.c.b16 %v1003, %v1000
        %v1049 = vpack.c.b16 %v1004, %v1001
        %v1050 = vpack.c.b16 %v1008, %v1005
        %v1051 = vpack.c.b16 %v1009, %v1006
        %v1052 = vpack.c.b16 %v1010, %v1007
        %v1053 = vpack.c.b16 %v1014, %v1011
        %v1054 = vpack.c.b16 %v1015, %v1012
        %v1055 = vpack.c.b16 %v1016, %v1013
        %v1056 = vpack.c.b16 %v1020, %v1017
        %v1057 = vpack.c.b16 %v1021, %v1018
        %v1058 = vpack.c.b16 %v1022, %v1019
        %v1059 = vpack.c.b16 %v1026, %v1023
        %v1060 = vpack.c.b16 %v1027, %v1024
        %v1061 = vpack.c.b16 %v1028, %v1025
        %v1062 = vpack.c.b16 %v1032, %v1029
        %v1063 = vpack.c.b16 %v1033, %v1030
        %v1064 = vpack.c.b16 %v1034, %v1031
        %v1065 = vpack.c.b16 %v1038, %v1035
        %v1066 = vpack.c.b16 %v1039, %v1036
        %v1067 = vpack.c.b16 %v1040, %v1037
        %v1068 = vpack.c.b16 %v1044, %v1041
        %v1069 = vpack.c.b16 %v1045, %v1042
        %v1070 = vpack.c.b16 %v1046, %v1043
        %vm1087 = vcmask 850944
        %v1089 = vsel %vm1087, %v1049, 0
        %v1092 = vsel %vm1087, %v1052, 0
        %v1095 = vsel %vm1087, %v1055, 0
        %v1098 = vsel %vm1087, %v1058, 0
        %v1101 = vsel %vm1087, %v1061, 0
        %v1104 = vsel %vm1087, %v1064, 0
        %v1107 = vsel %vm1087, %v1067, 0
        %v1110 = vsel %vm1087, %v1070, 0
        %vm1112 = vcmask 1043456
        %v1114 = vsel %vm1112, %v837, 0
        %v1117 = vsel %vm1112, %v838, 0
        %1119 = vmatprep.subr.bf16.mxu0 %v794
        %1120 = vmatpush1.bf16.msra.mxu0 %v793
        %1121 = vmatprep.subr.bf16.mxu0 %v796
        %1122 = vmatpush1.bf16.msra.mxu0 %v795
        %1123 = vmatprep.subr.bf16.mxu0 %v798
        %1124 = vmatpush1.bf16.msra.mxu0 %v797
        %1125 = vmatprep.subr.bf16.mxu0 %v800
        %1126 = vmatpush1.bf16.msra.mxu0 %v799
        %1127 = vmatprep.subr.bf16.mxu0 %v802
        %1128 = vmatpush1.bf16.msra.mxu0 %v801
        %1129 = vmatprep.subr.bf16.mxu0 %v804
        %1130 = vmatpush1.bf16.msra.mxu0 %v803
        %1131 = vmatprep.subr.bf16.mxu0 %v806
        %1132 = vmatpush1.bf16.msra.mxu0 %v805
        %1133 = vmatprep.subr.bf16.mxu0 %v808
        %1134 = vmatpush1.bf16.msra.mxu0 %v807
        %1135 = vmatprep.subr.bf16.mxu0 %v810
        %1136 = vmatpush1.bf16.msra.mxu0 %v809
        %1137 = vmatprep.subr.bf16.mxu0 %v812
        %1138 = vmatpush1.bf16.msra.mxu0 %v811
        %1139 = vmatprep.subr.bf16.mxu0 %v814
        %1140 = vmatpush1.bf16.msra.mxu0 %v813
        %1141 = vmatprep.subr.bf16.mxu0 %v816
        %1142 = vmatpush1.bf16.msra.mxu0 %v815
        %1143 = vmatprep.subr.bf16.mxu0 %v818
        %1144 = vmatpush1.bf16.msra.mxu0 %v817
        %1145 = vmatprep.subr.bf16.mxu0 %v820
        %1146 = vmatpush1.bf16.msra.mxu0 %v819
        %1147 = vmatprep.subr.bf16.mxu0 %v822
        %1148 = vmatpush1.bf16.msra.mxu0 %v821
        %1149 = vmatprep.subr.bf16.mxu0 %v824
        %1150 = vmatpush1.bf16.msra.mxu0 %v823
        %1151 = vmatprep.mubr.bf16.mxu0 %v1048
        %1152 = vmatmul.mubr.bf16.gmra.mrb[0].mxu0 %v1047
        %v1153 = vpop.f32.mrb[0].mxu0
        %v1154 = vadd.f32 %v890, %v1153
        %v1155 = vpop.f32.mrb[0].mxu0
        %v1156 = vadd.f32 %v890, %v1155
        %v1157 = vpop.f32.mrb[0].mxu0
        %v1158 = vadd.f32 %v895, %v1157
        %v1159 = vpop.f32.mrb[0].mxu0
        %v1160 = vadd.f32 %v895, %v1159
        %1161 = vmatprep.mubr.bf16.mxu0 %v1051
        %1162 = vmatmul.mubr.bf16.gmra.mrb[0].mxu0 %v1050
        %v1163 = vpop.f32.mrb[0].mxu0
        %v1164 = vadd.f32 %v900, %v1163
        %v1165 = vpop.f32.mrb[0].mxu0
        %v1166 = vadd.f32 %v900, %v1165
        %v1167 = vpop.f32.mrb[0].mxu0
        %v1168 = vadd.f32 %v905, %v1167
        %v1169 = vpop.f32.mrb[0].mxu0
        %v1170 = vadd.f32 %v905, %v1169
        %1171 = vmatprep.mubr.bf16.mxu0 %v1054
        %1172 = vmatmul.mubr.bf16.gmra.mrb[0].mxu0 %v1053
        %v1173 = vpop.f32.mrb[0].mxu0
        %v1174 = vadd.f32 %v910, %v1173
        %v1175 = vpop.f32.mrb[0].mxu0
        %v1176 = vadd.f32 %v910, %v1175
        %v1177 = vpop.f32.mrb[0].mxu0
        %v1178 = vadd.f32 %v915, %v1177
        %v1179 = vpop.f32.mrb[0].mxu0
        %v1180 = vadd.f32 %v915, %v1179
        %1181 = vmatprep.mubr.bf16.mxu0 %v1057
        %1182 = vmatmul.mubr.bf16.gmra.mrb[0].mxu0 %v1056
        %v1183 = vpop.f32.mrb[0].mxu0
        %v1184 = vadd.f32 %v920, %v1183
        %v1185 = vpop.f32.mrb[0].mxu0
        %v1186 = vadd.f32 %v920, %v1185
        %v1187 = vpop.f32.mrb[0].mxu0
        %v1188 = vadd.f32 %v925, %v1187
        %v1189 = vpop.f32.mrb[0].mxu0
        %v1190 = vadd.f32 %v925, %v1189
        %1191 = vmatprep.mubr.bf16.mxu0 %v1060
        %1192 = vmatmul.mubr.bf16.gmra.mrb[0].mxu0 %v1059
        %v1193 = vpop.f32.mrb[0].mxu0
        %v1194 = vadd.f32 %v930, %v1193
        %v1195 = vpop.f32.mrb[0].mxu0
        %v1196 = vadd.f32 %v930, %v1195
        %v1197 = vpop.f32.mrb[0].mxu0
        %v1198 = vadd.f32 %v935, %v1197
        %v1199 = vpop.f32.mrb[0].mxu0
        %v1200 = vadd.f32 %v935, %v1199
        %1201 = vmatprep.mubr.bf16.mxu0 %v1063
        %1202 = vmatmul.mubr.bf16.gmra.mrb[0].mxu0 %v1062
        %v1203 = vpop.f32.mrb[0].mxu0
        %v1204 = vadd.f32 %v940, %v1203
        %v1205 = vpop.f32.mrb[0].mxu0
        %v1206 = vadd.f32 %v940, %v1205
        %v1207 = vpop.f32.mrb[0].mxu0
        %v1208 = vadd.f32 %v945, %v1207
        %v1209 = vpop.f32.mrb[0].mxu0
        %v1210 = vadd.f32 %v945, %v1209
        %1211 = vmatprep.mubr.bf16.mxu0 %v1066
        %1212 = vmatmul.mubr.bf16.gmra.mrb[0].mxu0 %v1065
        %v1213 = vpop.f32.mrb[0].mxu0
        %v1214 = vadd.f32 %v950, %v1213
        %v1215 = vpop.f32.mrb[0].mxu0
        %v1216 = vadd.f32 %v950, %v1215
        %v1217 = vpop.f32.mrb[0].mxu0
        %v1218 = vadd.f32 %v955, %v1217
        %v1219 = vpop.f32.mrb[0].mxu0
        %v1220 = vadd.f32 %v955, %v1219
        %1221 = vmatprep.mubr.bf16.mxu0 %v1069
        %1222 = vmatmul.mubr.bf16.gmra.mrb[0].mxu0 %v1068
        %v1223 = vpop.f32.mrb[0].mxu0
        %v1224 = vadd.f32 %v960, %v1223
        %v1225 = vpop.f32.mrb[0].mxu0
        %v1226 = vadd.f32 %v960, %v1225
        %v1227 = vpop.f32.mrb[0].mxu0
        %v1228 = vadd.f32 %v965, %v1227
        %v1229 = vpop.f32.mrb[0].mxu0
        %v1230 = vadd.f32 %v965, %v1229
        %1231 = vdwg.mxu0
        %1232 = vmatprep.subr.bf16.mxu0 %v826
        %1233 = vmatpush1.bf16.msra.mxu0 %v825
        %1234 = vmatprep.subr.bf16.mxu0 %v828
        %1235 = vmatpush1.bf16.msra.mxu0 %v827
        %1236 = vmatprep.subr.bf16.mxu0 %v830
        %1237 = vmatpush1.bf16.msra.mxu0 %v829
        %1238 = vmatprep.subr.bf16.mxu0 %v832
        %1239 = vmatpush1.bf16.msra.mxu0 %v831
        %1240 = vmatprep.subr.bf16.mxu0 %v834
        %1241 = vmatpush1.bf16.msra.mxu0 %v833
        %1242 = vmatprep.subr.bf16.mxu0 %v836
        %1243 = vmatpush1.bf16.msra.mxu0 %v835
        %1244 = vmatprep.subr.bf16.mxu0 %v1117
        %1245 = vmatpush1.bf16.msra.mxu0 %v1114
        %1246 = vmatprep.subr.bf16.mxu0 0
        %1247 = vmatpush1.bf16.msra.mxu0 0
        %1248 = vmatprep.subr.bf16.mxu0 0
        %1249 = vmatpush1.bf16.msra.mxu0 0
        %1250 = vmatprep.subr.bf16.mxu0 0
        %1251 = vmatpush1.bf16.msra.mxu0 0
        %1252 = vmatprep.subr.bf16.mxu0 0
        %1253 = vmatpush1.bf16.msra.mxu0 0
        %1254 = vmatprep.subr.bf16.mxu0 0
        %1255 = vmatpush1.bf16.msra.mxu0 0
        %1256 = vmatprep.subr.bf16.mxu0 0
        %1257 = vmatpush1.bf16.msra.mxu0 0
        %1258 = vmatprep.subr.bf16.mxu0 0
        %1259 = vmatpush1.bf16.msra.mxu0 0
        %1260 = vmatprep.subr.bf16.mxu0 0
        %1261 = vmatpush1.bf16.msra.mxu0 0
        %1262 = vmatprep.subr.bf16.mxu0 0
        %1263 = vmatpush1.bf16.msra.mxu0 0
        %1264 = vmatprep.mubr.bf16.mxu0 0
        %1265 = vmatmul.mubr.bf16.gmra.mrb[0].mxu0 %v1089
        %v1266 = vpop.f32.mrb[0].mxu0
        %v1267 = vadd.f32 %v1154, %v1266
        %v1268 = vpop.f32.mrb[0].mxu0
        %v1269 = vadd.f32 %v1156, %v1268
        %v1270 = vpop.f32.mrb[0].mxu0
        %v1271 = vadd.f32 %v1158, %v1270
        %v1272 = vpop.f32.mrb[0].mxu0
        %v1273 = vadd.f32 %v1160, %v1272
        %1274 = vmatprep.mubr.bf16.mxu0 0
        %1275 = vmatmul.mubr.bf16.gmra.mrb[0].mxu0 %v1092
        %v1276 = vpop.f32.mrb[0].mxu0
        %v1277 = vadd.f32 %v1164, %v1276
        %v1278 = vpop.f32.mrb[0].mxu0
        %v1279 = vadd.f32 %v1166, %v1278
        %v1280 = vpop.f32.mrb[0].mxu0
        %v1281 = vadd.f32 %v1168, %v1280
        %v1282 = vpop.f32.mrb[0].mxu0
        %v1283 = vadd.f32 %v1170, %v1282
        %1284 = vmatprep.mubr.bf16.mxu0 0
        %1285 = vmatmul.mubr.bf16.gmra.mrb[0].mxu0 %v1095
        %v1286 = vpop.f32.mrb[0].mxu0
        %v1287 = vadd.f32 %v1174, %v1286
        %v1288 = vpop.f32.mrb[0].mxu0
        %v1289 = vadd.f32 %v1176, %v1288
        %v1290 = vpop.f32.mrb[0].mxu0
        %v1291 = vadd.f32 %v1178, %v1290
        %v1292 = vpop.f32.mrb[0].mxu0
        %v1293 = vadd.f32 %v1180, %v1292
        %1294 = vmatprep.mubr.bf16.mxu0 0
        %1295 = vmatmul.mubr.bf16.gmra.mrb[0].mxu0 %v1098
        %v1296 = vpop.f32.mrb[0].mxu0
        %v1297 = vadd.f32 %v1184, %v1296
        %v1298 = vpop.f32.mrb[0].mxu0
        %v1299 = vadd.f32 %v1186, %v1298
        %v1300 = vpop.f32.mrb[0].mxu0
        %v1301 = vadd.f32 %v1188, %v1300
        %v1302 = vpop.f32.mrb[0].mxu0
        %v1303 = vadd.f32 %v1190, %v1302
        %1304 = vmatprep.mubr.bf16.mxu0 0
        %1305 = vmatmul.mubr.bf16.gmra.mrb[0].mxu0 %v1101
        %v1306 = vpop.f32.mrb[0].mxu0
        %v1307 = vadd.f32 %v1194, %v1306
        %v1308 = vpop.f32.mrb[0].mxu0
        %v1309 = vadd.f32 %v1196, %v1308
        %v1310 = vpop.f32.mrb[0].mxu0
        %v1311 = vadd.f32 %v1198, %v1310
        %v1312 = vpop.f32.mrb[0].mxu0
        %v1313 = vadd.f32 %v1200, %v1312
        %1314 = vmatprep.mubr.bf16.mxu0 0
        %1315 = vmatmul.mubr.bf16.gmra.mrb[0].mxu0 %v1104
        %v1316 = vpop.f32.mrb[0].mxu0
        %v1317 = vadd.f32 %v1204, %v1316
        %v1318 = vpop.f32.mrb[0].mxu0
        %v1319 = vadd.f32 %v1206, %v1318
        %v1320 = vpop.f32.mrb[0].mxu0
        %v1321 = vadd.f32 %v1208, %v1320
        %v1322 = vpop.f32.mrb[0].mxu0
        %v1323 = vadd.f32 %v1210, %v1322
        %1324 = vmatprep.mubr.bf16.mxu0 0
        %1325 = vmatmul.mubr.bf16.gmra.mrb[0].mxu0 %v1107
        %v1326 = vpop.f32.mrb[0].mxu0
        %v1327 = vadd.f32 %v1214, %v1326
        %v1328 = vpop.f32.mrb[0].mxu0
        %v1329 = vadd.f32 %v1216, %v1328
        %v1330 = vpop.f32.mrb[0].mxu0
        %v1331 = vadd.f32 %v1218, %v1330
        %v1332 = vpop.f32.mrb[0].mxu0
        %v1333 = vadd.f32 %v1220, %v1332
        %1334 = vmatprep.mubr.bf16.mxu0 0
        %1335 = vmatmul.mubr.bf16.gmra.mrb[0].mxu0 %v1110
        %v1336 = vpop.f32.mrb[0].mxu0
        %v1337 = vadd.f32 %v1224, %v1336
        %v1338 = vpop.f32.mrb[0].mxu0
        %v1339 = vadd.f32 %v1226, %v1338
        %v1340 = vpop.f32.mrb[0].mxu0
        %v1341 = vadd.f32 %v1228, %v1340
        %v1342 = vpop.f32.mrb[0].mxu0
        %v1343 = vadd.f32 %v1230, %v1342
        %1344 = vdwg.mxu0
        %v1345 = vxor.u32 %v1267, 2147483648
        %v1346 = vxor.u32 %v1269, 2147483648
        %v1347 = vxor.u32 %v1271, 2147483648
        %v1348 = vxor.u32 %v1273, 2147483648
        %v1349 = vxor.u32 %v1277, 2147483648
        %v1350 = vxor.u32 %v1279, 2147483648
        %v1351 = vxor.u32 %v1281, 2147483648
        %v1352 = vxor.u32 %v1283, 2147483648
        %v1353 = vmul.f32 %v1345, 1.442695
        %v1354 = vpow.pop %v1353
        %v1355 = vmul.f32 %v1346, 1.442695
        %v1356 = vpow.pop %v1355
        %v1357 = vmul.f32 %v1347, 1.442695
        %v1358 = vpow.pop %v1357
        %v1359 = vmul.f32 %v1348, 1.442695
        %v1360 = vpow.pop %v1359
        %v1361 = vmul.f32 %v1349, 1.442695
        %v1362 = vpow.pop %v1361
        %v1363 = vmul.f32 %v1350, 1.442695
        %v1364 = vpow.pop %v1363
        %v1365 = vmul.f32 %v1351, 1.442695
        %v1366 = vpow.pop %v1365
        %v1367 = vmul.f32 %v1352, 1.442695
        %v1368 = vpow.pop %v1367
        %v1369 = vadd.f32 %v1354, 1.0
        %v1370 = vadd.f32 %v1356, 1.0
        %v1371 = vadd.f32 %v1358, 1.0
        %v1372 = vadd.f32 %v1360, 1.0
        %v1373 = vadd.f32 %v1362, 1.0
        %v1374 = vadd.f32 %v1364, 1.0
        %v1375 = vadd.f32 %v1366, 1.0
        %v1376 = vadd.f32 %v1368, 1.0
        %v1377 = vrcp.pop %v1369
        %v1378 = vmul.f32 1.0, %v1377
        %v1379 = vrcp.pop %v1370
        %v1380 = vmul.f32 1.0, %v1379
        %v1381 = vrcp.pop %v1371
        %v1382 = vmul.f32 1.0, %v1381
        %v1383 = vrcp.pop %v1372
        %v1384 = vmul.f32 1.0, %v1383
        %v1385 = vrcp.pop %v1373
        %v1386 = vmul.f32 1.0, %v1385
        %v1387 = vrcp.pop %v1374
        %v1388 = vmul.f32 1.0, %v1387
        %v1389 = vrcp.pop %v1375
        %v1390 = vmul.f32 1.0, %v1389
        %v1391 = vrcp.pop %v1376
        %v1392 = vmul.f32 1.0, %v1391
        %v1393 = vxor.u32 %v1287, 2147483648
        %v1394 = vxor.u32 %v1289, 2147483648
        %v1395 = vxor.u32 %v1291, 2147483648
        %v1396 = vxor.u32 %v1293, 2147483648
        %v1397 = vxor.u32 %v1297, 2147483648
        %v1398 = vxor.u32 %v1299, 2147483648
        %v1399 = vxor.u32 %v1301, 2147483648
        %v1400 = vxor.u32 %v1303, 2147483648
        %v1401 = vmul.f32 %v1393, 1.442695
        %v1402 = vpow.pop %v1401
        %v1403 = vmul.f32 %v1394, 1.442695
        %v1404 = vpow.pop %v1403
        %v1405 = vmul.f32 %v1395, 1.442695
        %v1406 = vpow.pop %v1405
        %v1407 = vmul.f32 %v1396, 1.442695
        %v1408 = vpow.pop %v1407
        %v1409 = vmul.f32 %v1397, 1.442695
        %v1410 = vpow.pop %v1409
        %v1411 = vmul.f32 %v1398, 1.442695
        %v1412 = vpow.pop %v1411
        %v1413 = vmul.f32 %v1399, 1.442695
        %v1414 = vpow.pop %v1413
        %v1415 = vmul.f32 %v1400, 1.442695
        %v1416 = vpow.pop %v1415
        %v1417 = vadd.f32 %v1402, 1.0
        %v1418 = vadd.f32 %v1404, 1.0
        %v1419 = vadd.f32 %v1406, 1.0
        %v1420 = vadd.f32 %v1408, 1.0
        %v1421 = vadd.f32 %v1410, 1.0
        %v1422 = vadd.f32 %v1412, 1.0
        %v1423 = vadd.f32 %v1414, 1.0
        %v1424 = vadd.f32 %v1416, 1.0
        %v1425 = vrcp.pop %v1417
        %v1426 = vmul.f32 1.0, %v1425
        %v1427 = vrcp.pop %v1418
        %v1428 = vmul.f32 1.0, %v1427
        %v1429 = vrcp.pop %v1419
        %v1430 = vmul.f32 1.0, %v1429
        %v1431 = vrcp.pop %v1420
        %v1432 = vmul.f32 1.0, %v1431
        %v1433 = vrcp.pop %v1421
        %v1434 = vmul.f32 1.0, %v1433
        %v1435 = vrcp.pop %v1422
        %v1436 = vmul.f32 1.0, %v1435
        %v1437 = vrcp.pop %v1423
        %v1438 = vmul.f32 1.0, %v1437
        %v1439 = vrcp.pop %v1424
        %v1440 = vmul.f32 1.0, %v1439
        %v1441 = vxor.u32 %v1307, 2147483648
        %v1442 = vxor.u32 %v1309, 2147483648
        %v1443 = vxor.u32 %v1311, 2147483648
        %v1444 = vxor.u32 %v1313, 2147483648
        %v1445 = vxor.u32 %v1317, 2147483648
        %v1446 = vxor.u32 %v1319, 2147483648
        %v1447 = vxor.u32 %v1321, 2147483648
        %v1448 = vxor.u32 %v1323, 2147483648
        %v1449 = vmul.f32 %v1441, 1.442695
        %v1450 = vpow.pop %v1449
        %v1451 = vmul.f32 %v1442, 1.442695
        %v1452 = vpow.pop %v1451
        %v1453 = vmul.f32 %v1443, 1.442695
        %v1454 = vpow.pop %v1453
        %v1455 = vmul.f32 %v1444, 1.442695
        %v1456 = vpow.pop %v1455
        %v1457 = vmul.f32 %v1445, 1.442695
        %v1458 = vpow.pop %v1457
        %v1459 = vmul.f32 %v1446, 1.442695
        %v1460 = vpow.pop %v1459
        %v1461 = vmul.f32 %v1447, 1.442695
        %v1462 = vpow.pop %v1461
        %v1463 = vmul.f32 %v1448, 1.442695
        %v1464 = vpow.pop %v1463
        %v1465 = vadd.f32 %v1450, 1.0
        %v1466 = vadd.f32 %v1452, 1.0
        %v1467 = vadd.f32 %v1454, 1.0
        %v1468 = vadd.f32 %v1456, 1.0
        %v1469 = vadd.f32 %v1458, 1.0
        %v1470 = vadd.f32 %v1460, 1.0
        %v1471 = vadd.f32 %v1462, 1.0
        %v1472 = vadd.f32 %v1464, 1.0
        %v1473 = vrcp.pop %v1465
        %v1474 = vmul.f32 1.0, %v1473
        %v1475 = vrcp.pop %v1466
        %v1476 = vmul.f32 1.0, %v1475
        %v1477 = vrcp.pop %v1467
        %v1478 = vmul.f32 1.0, %v1477
        %v1479 = vrcp.pop %v1468
        %v1480 = vmul.f32 1.0, %v1479
        %v1481 = vrcp.pop %v1469
        %v1482 = vmul.f32 1.0, %v1481
        %v1483 = vrcp.pop %v1470
        %v1484 = vmul.f32 1.0, %v1483
        %v1485 = vrcp.pop %v1471
        %v1486 = vmul.f32 1.0, %v1485
        %v1487 = vrcp.pop %v1472
        %v1488 = vmul.f32 1.0, %v1487
        %v1489 = vtanh.pop %v1327
        %v1490 = vtanh.pop %v1329
        %v1491 = vtanh.pop %v1331
        %v1492 = vtanh.pop %v1333
        %v1493 = vtanh.pop %v1337
        %v1494 = vtanh.pop %v1339
        %v1495 = vtanh.pop %v1341
        %v1496 = vtanh.pop %v1343
        %v1497 = vld [vmem:[%s311] sm:$0xff]
        %v1498 = vld [vmem:[%s311 + $0x8] sm:$0xff]
        %v1499 = vld [vmem:[%s311 + $0x10] sm:$0xff]
        %v1500 = vld [vmem:[%s311 + $0x18] sm:$0xff]
        %v1501 = vld [vmem:[%s311 + $0x20] sm:$0xff]
        %v1502 = vld [vmem:[%s311 + $0x28] sm:$0xff]
        %v1503 = vld [vmem:[%s311 + $0x30] sm:$0xff]
        %v1504 = vld [vmem:[%s311 + $0x38] sm:$0xff]
        %v1505 = vmul.f32 %v1426, %v1497
        %v1506 = vmul.f32 %v1428, %v1498
        %v1507 = vmul.f32 %v1430, %v1499
        %v1508 = vmul.f32 %v1432, %v1500
        %v1509 = vmul.f32 %v1434, %v1501
        %v1510 = vmul.f32 %v1436, %v1502
        %v1511 = vmul.f32 %v1438, %v1503
        %v1512 = vmul.f32 %v1440, %v1504
        %v1513 = vmul.f32 %v1378, %v1489
        %v1514 = vmul.f32 %v1380, %v1490
        %v1515 = vmul.f32 %v1382, %v1491
        %v1516 = vmul.f32 %v1384, %v1492
        %v1517 = vmul.f32 %v1386, %v1493
        %v1518 = vmul.f32 %v1388, %v1494
        %v1519 = vmul.f32 %v1390, %v1495
        %v1520 = vmul.f32 %v1392, %v1496
        %v1521 = vadd.f32 %v1505, %v1513
        %v1522 = vadd.f32 %v1506, %v1514
        %v1523 = vadd.f32 %v1507, %v1515
        %v1524 = vadd.f32 %v1508, %v1516
        %v1525 = vadd.f32 %v1509, %v1517
        %v1526 = vadd.f32 %v1510, %v1518
        %v1527 = vadd.f32 %v1511, %v1519
        %v1528 = vadd.f32 %v1512, %v1520
        %v1529 = vtanh.pop %v1521
        %v1530 = vtanh.pop %v1522
        %v1531 = vtanh.pop %v1523
        %v1532 = vtanh.pop %v1524
        %v1533 = vtanh.pop %v1525
        %v1534 = vtanh.pop %v1526
        %v1535 = vtanh.pop %v1527
        %v1536 = vtanh.pop %v1528
        %v1537 = vmul.f32 %v1474, %v1529
        %v1538 = vmul.f32 %v1476, %v1530
        %v1539 = vmul.f32 %v1478, %v1531
        %v1540 = vmul.f32 %v1480, %v1532
        %v1541 = vmul.f32 %v1482, %v1533
        %v1542 = vmul.f32 %v1484, %v1534
        %v1543 = vmul.f32 %v1486, %v1535
        %v1544 = vmul.f32 %v1488, %v1536
        %1545 = vst [vmem:[%s338] sm:$0xff] %v1537
        %1546 = vst [vmem:[%s338 + $0x8] sm:$0xff] %v1538
        %1547 = vst [vmem:[%s338 + $0x10] sm:$0xff] %v1539
        %1548 = vst [vmem:[%s338 + $0x18] sm:$0xff] %v1540
        %1549 = vst [vmem:[%s338 + $0x20] sm:$0xff] %v1541
        %1550 = vst [vmem:[%s338 + $0x28] sm:$0xff] %v1542
        %1551 = vst [vmem:[%s338 + $0x30] sm:$0xff] %v1543
        %1552 = vst [vmem:[%s338 + $0x38] sm:$0xff] %v1544
        %1553 = vst [vmem:[%s344] sm:$0xff] %v1521
        %1554 = vst [vmem:[%s344 + $0x8] sm:$0xff] %v1522
        %1555 = vst [vmem:[%s344 + $0x10] sm:$0xff] %v1523
        %1556 = vst [vmem:[%s344 + $0x18] sm:$0xff] %v1524
        %1557 = vst [vmem:[%s344 + $0x20] sm:$0xff] %v1525
        %1558 = vst [vmem:[%s344 + $0x28] sm:$0xff] %v1526
        %1559 = vst [vmem:[%s344 + $0x30] sm:$0xff] %v1527
        %1560 = vst [vmem:[%s344 + $0x38] sm:$0xff] %v1528
        %s1561 = sand.u32 %s141, 1
        %s1562 = sand.u32 %s141, 1
        %s1563 = smul.addr %s1562, 64
        %s1564 = scalar_lea.vmem [#allocation4], %s1563
        %s1565 = sand.u32 %s167, 1
        %s1566 = sand.u32 %s167, 1
        %s1567 = smul.addr %s1566, 64
        %s1568 = scalar_lea.vmem [#allocation5], %s1567
        // Predicated region
        $region87: #{convlstm_cell_forward.1} parent=77 // pred_check
          %p1569 = pneg %p151
        $region88: #{convlstm_cell_forward.1} parent=77 // pred_check_branch
          %1571 = sbr.rel (%p1569) target = $region90
        $region89: #{convlstm_cell_forward.1} parent=77 // pred_region
          %s1572 = smul.u32 2, %s18
          %s1573 = smul.addr %s1572, 8
          %s1574 = scalar_lea.vmem %s5, %s1573
          // Predicated region
          $region91: #{convlstm_cell_forward.1} parent=89 // pred_check
            _
          $region92: #{convlstm_cell_forward.1} parent=89 // pred_check_branch
            %1576 = sbr.rel (0) target = $region94
          $region93: #{convlstm_cell_forward.1} parent=89 // pred_region
            // Predicated region
            $region95: #{convlstm_cell_forward.1} parent=93 // pred_check
              _
            $region96: #{convlstm_cell_forward.1} parent=93 // pred_check_branch
              %1578 = sbr.rel (0) target = $region98
            $region97: #{convlstm_cell_forward.1} parent=93 // pred_region
              loop: start=0, step=1, limit=1
              $region99: #{convlstm_cell_forward.1} parent=97 // loop_pre_header
                _
              $region100: #{convlstm_cell_forward.1} parent=97 // loop_header
                %s1580 = sphi 0, %s1584
                %p1581 = scmp.ge.s32.totalorder %s1580, 1
                %s1585 = sphi %s1564, %s1564
                %s1586 = sphi %s1574, %s1574
              $region101: #{convlstm_cell_forward.1} parent=97 // loop_header_branch
                %1583 = sbr.rel (%p1581) target = $region105
              $region102: #{convlstm_cell_forward.1} parent=97 // loop_body
                %v1587 = vld [vmem:[%s1585] sm:$0xff]
                %1588 = vst [vmem:[%s1586] sm:$0xff] %v1587
                %v1589 = vld [vmem:[%s1585 + $0x8] sm:$0xff]
                %1590 = vst [vmem:[%s1586 + $0x8] sm:$0xff] %v1589
                %v1591 = vld [vmem:[%s1585 + $0x10] sm:$0xff]
                %1592 = vst [vmem:[%s1586 + $0x20] sm:$0xff] %v1591
                %v1593 = vld [vmem:[%s1585 + $0x18] sm:$0xff]
                %1594 = vst [vmem:[%s1586 + $0x28] sm:$0xff] %v1593
                %v1595 = vld [vmem:[%s1585 + $0x20] sm:$0xff]
                %1596 = vst [vmem:[%s1586 + $0x40] sm:$0xff] %v1595
                %v1597 = vld [vmem:[%s1585 + $0x28] sm:$0xff]
                %1598 = vst [vmem:[%s1586 + $0x48] sm:$0xff] %v1597
                %v1599 = vld [vmem:[%s1585 + $0x30] sm:$0xff]
                %1600 = vst [vmem:[%s1586 + $0x60] sm:$0xff] %v1599
                %v1601 = vld [vmem:[%s1585 + $0x38] sm:$0xff]
                %1602 = vst [vmem:[%s1586 + $0x68] sm:$0xff] %v1601
              $region103: #{convlstm_cell_forward.1} parent=97 // loop_footer
                %s1584 = sadd.s32 1, %s1580
              $region104: #{convlstm_cell_forward.1} parent=97 // loop_footer_branch
                %1579 = sbr.rel target = $region100
              $region105: #{convlstm_cell_forward.1} parent=97 // loop_exit
                _
            $region98: #{convlstm_cell_forward.1} parent=93 // pred_fallthru
              _
            // Predicated region
            $region106: #{convlstm_cell_forward.1} parent=93 // pred_check
              _
            $region107: #{convlstm_cell_forward.1} parent=93 // pred_check_branch
              %1604 = sbr.rel target = $region109
            $region108: #{convlstm_cell_forward.1} parent=93 // pred_region
              _
            $region109: #{convlstm_cell_forward.1} parent=93 // pred_fallthru
              _
          $region94: #{convlstm_cell_forward.1} parent=89 // pred_fallthru
            _
          %1605 = vnop
        $region90: #{convlstm_cell_forward.1} parent=77 // pred_fallthru
          _
        // Predicated region
        $region110: #{convlstm_cell_forward.1} parent=77 // pred_check
          %p1606 = pneg %p177
        $region111: #{convlstm_cell_forward.1} parent=77 // pred_check_branch
          %1608 = sbr.rel (%p1606) target = $region113
        $region112: #{convlstm_cell_forward.1} parent=77 // pred_region
          %s1609 = smul.u32 2, %s18
          %s1610 = smul.addr %s1609, 8
          %s1611 = scalar_lea.vmem %s6, %s1610
          // Predicated region
          $region114: #{convlstm_cell_forward.1} parent=112 // pred_check
            _
          $region115: #{convlstm_cell_forward.1} parent=112 // pred_check_branch
            %1613 = sbr.rel (0) target = $region117
          $region116: #{convlstm_cell_forward.1} parent=112 // pred_region
            // Predicated region
            $region118: #{convlstm_cell_forward.1} parent=116 // pred_check
              _
            $region119: #{convlstm_cell_forward.1} parent=116 // pred_check_branch
              %1615 = sbr.rel (0) target = $region121
            $region120: #{convlstm_cell_forward.1} parent=116 // pred_region
              loop: start=0, step=1, limit=1
              $region122: #{convlstm_cell_forward.1} parent=120 // loop_pre_header
                _
              $region123: #{convlstm_cell_forward.1} parent=120 // loop_header
                %s1617 = sphi 0, %s1621
                %p1618 = scmp.ge.s32.totalorder %s1617, 1
                %s1622 = sphi %s1568, %s1568
                %s1623 = sphi %s1611, %s1611
              $region124: #{convlstm_cell_forward.1} parent=120 // loop_header_branch
                %1620 = sbr.rel (%p1618) target = $region128
              $region125: #{convlstm_cell_forward.1} parent=120 // loop_body
                %v1624 = vld [vmem:[%s1622] sm:$0xff]
                %1625 = vst [vmem:[%s1623] sm:$0xff] %v1624
                %v1626 = vld [vmem:[%s1622 + $0x8] sm:$0xff]
                %1627 = vst [vmem:[%s1623 + $0x8] sm:$0xff] %v1626
                %v1628 = vld [vmem:[%s1622 + $0x10] sm:$0xff]
                %1629 = vst [vmem:[%s1623 + $0x20] sm:$0xff] %v1628
                %v1630 = vld [vmem:[%s1622 + $0x18] sm:$0xff]
                %1631 = vst [vmem:[%s1623 + $0x28] sm:$0xff] %v1630
                %v1632 = vld [vmem:[%s1622 + $0x20] sm:$0xff]
                %1633 = vst [vmem:[%s1623 + $0x40] sm:$0xff] %v1632
                %v1634 = vld [vmem:[%s1622 + $0x28] sm:$0xff]
                %1635 = vst [vmem:[%s1623 + $0x48] sm:$0xff] %v1634
                %v1636 = vld [vmem:[%s1622 + $0x30] sm:$0xff]
                %1637 = vst [vmem:[%s1623 + $0x60] sm:$0xff] %v1636
                %v1638 = vld [vmem:[%s1622 + $0x38] sm:$0xff]
                %1639 = vst [vmem:[%s1623 + $0x68] sm:$0xff] %v1638
              $region126: #{convlstm_cell_forward.1} parent=120 // loop_footer
                %s1621 = sadd.s32 1, %s1617
              $region127: #{convlstm_cell_forward.1} parent=120 // loop_footer_branch
                %1616 = sbr.rel target = $region123
              $region128: #{convlstm_cell_forward.1} parent=120 // loop_exit
                _
            $region121: #{convlstm_cell_forward.1} parent=116 // pred_fallthru
              _
            // Predicated region
            $region129: #{convlstm_cell_forward.1} parent=116 // pred_check
              _
            $region130: #{convlstm_cell_forward.1} parent=116 // pred_check_branch
              %1641 = sbr.rel target = $region132
            $region131: #{convlstm_cell_forward.1} parent=116 // pred_region
              _
            $region132: #{convlstm_cell_forward.1} parent=116 // pred_fallthru
              _
          $region117: #{convlstm_cell_forward.1} parent=112 // pred_fallthru
            _
          %1642 = vnop
        $region113: #{convlstm_cell_forward.1} parent=77 // pred_fallthru
          _
      $region78: #{convlstm_cell_forward.1} parent=5 // pred_fallthru
        _
      %p1643 = scmp.le.s32.totalorder 2, %s13
      // Predicated region
      $region133: #{convlstm_cell_forward.1} parent=5 // pred_check
        %p1644 = pneg %p1643
      $region134: #{convlstm_cell_forward.1} parent=5 // pred_check_branch
        %1646 = sbr.rel (%p1644) target = $region136
      $region135: #{convlstm_cell_forward.1} parent=5 // pred_region
        %s1647 = ssub.s32 %s13, 2
        // Predicated region
        $region137: #{convlstm_cell_forward.1} parent=135 // pred_check
          %p1648 = pneg %p157
        $region138: #{convlstm_cell_forward.1} parent=135 // pred_check_branch
          %1650 = sbr.rel (%p1648) target = $region140
        $region139: #{convlstm_cell_forward.1} parent=135 // pred_region
          %s1651 = sand.u32 %s142, 1
          %s1652 = sand.u32 %s142, 1
          %s1653 = smul.addr %s1652, 64
          %s1654 = scalar_lea.vmem [#allocation4], %s1653
        $region140: #{convlstm_cell_forward.1} parent=135 // pred_fallthru
          _
        // Predicated region
        $region141: #{convlstm_cell_forward.1} parent=135 // pred_check
          %p1655 = pneg %p183
        $region142: #{convlstm_cell_forward.1} parent=135 // pred_check_branch
          %1657 = sbr.rel (%p1655) target = $region144
        $region143: #{convlstm_cell_forward.1} parent=135 // pred_region
          %s1658 = sand.u32 %s168, 1
          %s1659 = sand.u32 %s168, 1
          %s1660 = smul.addr %s1659, 64
          %s1661 = scalar_lea.vmem [#allocation5], %s1660
        $region144: #{convlstm_cell_forward.1} parent=135 // pred_fallthru
          _
      $region136: #{convlstm_cell_forward.1} parent=5 // pred_fallthru
        _
    $region6: #{convlstm_cell_forward.1} parent=1 // loop_footer
      %s17 = sadd.s32 1, %s13
    $region7: #{convlstm_cell_forward.1} parent=1 // loop_footer_branch
      %12 = sbr.rel target = $region3
    $region8: #{convlstm_cell_forward.1} parent=1 // loop_exit
      _

</llo_original>
